<compile_context>
chip_gen: v6e
topology: v6e:2x2x1
jax: 0.10.0
libtpu: 0.0.40
codegen_flags: <defaults>
</compile_context>

<pallas_src>
import functools

import jax
import jax.numpy as jnp
from jax.experimental import pallas as pl
from jax.experimental.pallas import tpu as pltpu

LANE = 128
SUBLANE = 8
NEG_INF = -1e30


def _round_up(x, m):
    return ((x + m - 1) // m) * m


# ----------------------------------------------------------------------------
# Fused decode-step kernel (embedding gather + L GRU cells + linear + log_softmax)
# ----------------------------------------------------------------------------
def decoder_step_kernel(tokens_ref,    # SMEM (bsz_pad,) int32
                        emb_ref,       # VMEM (V, H)
                        h_ref,         # VMEM (L, bsz_pad, H)
                        wih_ref,       # VMEM (L*3, H, H)  per-gate, pre-transposed
                        whh_ref,       # VMEM (L*3, H, H)
                        bih_ref,       # VMEM (L*3, 1, H)
                        bhh_ref,       # VMEM (L*3, 1, H)
                        ow_ref,        # VMEM (H, V_pad)   pre-transposed, zero-padded
                        ob_ref,        # VMEM (1, V_pad)   pad lanes = -1e30
                        logp_ref,      # VMEM (bsz_pad, V_pad) output
                        hout_ref,      # VMEM (L, bsz_pad, H)  output
                        x_scratch,     # VMEM (bsz_pad, H)
                        *, nlayers, bsz_pad):
    # --- embedding gather: dynamic row slice of the VMEM-resident table -------
    for b in range(bsz_pad):                       # static, tiny trip count
        tok = tokens_ref[b]
        x_scratch[pl.ds(b, 1), :] = emb_ref[pl.ds(tok, 1), :]
    x = x_scratch[...]                             # (bsz_pad, H) f32
    # dropout(embedded) == identity in eval mode

    # --- stacked GRU cells, PyTorch gate ordering [r, z, n] --------------------
    for l in range(nlayers):
        h = h_ref[l]                               # (bsz_pad, H)
        gi_r = jnp.dot(x, wih_ref[3 * l + 0], preferred_element_type=jnp.float32) + bih_ref[3 * l + 0]
        gi_z = jnp.dot(x, wih_ref[3 * l + 1], preferred_element_type=jnp.float32) + bih_ref[3 * l + 1]
        gi_n = jnp.dot(x, wih_ref[3 * l + 2], preferred_element_type=jnp.float32) + bih_ref[3 * l + 2]
        gh_r = jnp.dot(h, whh_ref[3 * l + 0], preferred_element_type=jnp.float32) + bhh_ref[3 * l + 0]
        gh_z = jnp.dot(h, whh_ref[3 * l + 1], preferred_element_type=jnp.float32) + bhh_ref[3 * l + 1]
        gh_n = jnp.dot(h, whh_ref[3 * l + 2], preferred_element_type=jnp.float32) + bhh_ref[3 * l + 2]
        r = jax.nn.sigmoid(gi_r + gh_r)
        z = jax.nn.sigmoid(gi_z + gh_z)
        n = jnp.tanh(gi_n + r * gh_n)
        h_new = (1.0 - z) * n + z * h
        hout_ref[l] = h_new.astype(hout_ref.dtype)
        x = h_new                                  # inter-layer dropout == identity

    # --- output projection + numerically stable log_softmax -------------------
    # (pad lanes have -1e30 bias -> exp underflows to 0, so reduction matches the
    #  unpadded vocab exactly; output store is lane-dense over V_pad.)
    logits = jnp.dot(x, ow_ref[...], preferred_element_type=jnp.float32) + ob_ref[...]
    m = jnp.max(logits, axis=-1, keepdims=True)
    s = logits - m
    lse = jnp.log(jnp.sum(jnp.exp(s), axis=-1, keepdims=True))
    logp_ref[...] = (s - lse).astype(logp_ref.dtype)


# ----------------------------------------------------------------------------
# One-time parameter preparation (no per-call transposes/reshapes)
# ----------------------------------------------------------------------------
def prepare_params(params, hidden_size, output_size):
    H, V = hidden_size, output_size
    V_pad = _round_up(V, LANE)

    wih, whh, bih, bhh = [], [], [], []
    for layer in params["gru"]:
        # PyTorch layout: (3H, H), gate order [r, z, n]; pre-transpose per gate.
        wih.append(jnp.transpose(layer["w_ih"].reshape(3, H, H), (0, 2, 1)))
        whh.append(jnp.transpose(layer["w_hh"].reshape(3, H, H), (0, 2, 1)))
        bih.append(layer["b_ih"].reshape(3, 1, H))
        bhh.append(layer["b_hh"].reshape(3, 1, H))

    out_w_t = jnp.zeros((H, V_pad), jnp.float32).at[:, :V].set(params["out_w"].T)
    out_b = jnp.full((1, V_pad), NEG_INF, jnp.float32).at[0, :V].set(params["out_b"])

    return {
        "emb": params["embedding"].astype(jnp.float32),            # (V, H)
        "wih": jnp.concatenate(wih, axis=0).astype(jnp.float32),   # (L*3, H, H)
        "whh": jnp.concatenate(whh, axis=0).astype(jnp.float32),   # (L*3, H, H)
        "bih": jnp.concatenate(bih, axis=0).astype(jnp.float32),   # (L*3, 1, H)
        "bhh": jnp.concatenate(bhh, axis=0).astype(jnp.float32),   # (L*3, 1, H)
        "out_w_t": out_w_t,                                        # (H, V_pad)
        "out_b": out_b,                                            # (1, V_pad)
        "output_size": V,
    }


# ----------------------------------------------------------------------------
# Forward wrapper (single fused pallas_call; everything VMEM-resident)
# ----------------------------------------------------------------------------
def decoder_rnn_forward(prepared, tokens, hidden):
    """
    tokens : (bsz,) int32 token ids
    hidden : (nlayers, bsz, hidden_size) float32
    returns (log_probs (bsz, output_size), new_hidden (nlayers, bsz, hidden_size))
    """
    L, bsz, H = hidden.shape
    V = prepared["output_size"]
    V_pad = prepared["out_w_t"].shape[1]
    bsz_pad = _round_up(max(bsz, SUBLANE), SUBLANE)

    if bsz_pad != bsz:
        tokens_p = jnp.zeros((bsz_pad,), jnp.int32).at[:bsz].set(tokens)
        hidden_p = jnp.zeros((L, bsz_pad, H), hidden.dtype).at[:, :bsz, :].set(hidden)
    else:
        tokens_p = tokens.astype(jnp.int32)
        hidden_p = hidden

    vmem = functools.partial(pl.BlockSpec, memory_space=pltpu.MemorySpace.VMEM)
    smem = functools.partial(pl.BlockSpec, memory_space=pltpu.MemorySpace.SMEM)

    kernel = functools.partial(decoder_step_kernel, nlayers=L, bsz_pad=bsz_pad)
    logp_pad, h_new = pl.pallas_call(
        kernel,
        out_shape=(
            jax.ShapeDtypeStruct((bsz_pad, V_pad), jnp.float32),
            jax.ShapeDtypeStruct((L, bsz_pad, H), jnp.float32),
        ),
        in_specs=[
            smem(),                            # tokens
            vmem(),                            # embedding table
            vmem(),                            # hidden state
            vmem(), vmem(), vmem(), vmem(),    # GRU weights / biases
            vmem(), vmem(),                    # output projection
        ],
        out_specs=(vmem(), vmem()),
        scratch_shapes=[pltpu.VMEM((bsz_pad, H), jnp.float32)],
    )(tokens_p, prepared["emb"], hidden_p,
      prepared["wih"], prepared["whh"], prepared["bih"], prepared["bhh"],
      prepared["out_w_t"], prepared["out_b"])

    return logp_pad[:bsz, :V], h_new[:, :bsz, :]


# ----------------------------------------------------------------------------
# PyTorch-shaped parameter init + pure-JAX reference (for correctness check)
# ----------------------------------------------------------------------------
def init_params(key, hidden_size, output_size, nlayers):
    H, V = hidden_size, output_size
    scale = 1.0 / jnp.sqrt(jnp.float32(H))
    keys = jax.random.split(key, 4 + 4 * nlayers)
    k = iter(keys)

    params = {"embedding": jax.random.uniform(next(k), (V, H), jnp.float32, -scale, scale)}
    gru_layers = []
    for _ in range(nlayers):
        gru_layers.append({
            "w_ih": jax.random.uniform(next(k), (3 * H, H), jnp.float32, -scale, scale),
            "w_hh": jax.random.uniform(next(k), (3 * H, H), jnp.float32, -scale, scale),
            "b_ih": jax.random.uniform(next(k), (3 * H,), jnp.float32, -scale, scale),
            "b_hh": jax.random.uniform(next(k), (3 * H,), jnp.float32, -scale, scale),
        })
    params["gru"] = gru_layers
    params["out_w"] = jax.random.uniform(next(k), (V, H), jnp.float32, -scale, scale)
    params["out_b"] = jax.random.uniform(next(k), (V,), jnp.float32, -scale, scale)
    return params


def reference_forward(params, tokens, hidden):
    H = params["gru"][0]["w_ih"].shape[1]
    x = params["embedding"][tokens]
    new_h = []
    for l, layer in enumerate(params["gru"]):
        h = hidden[l]
        gi = x @ layer["w_ih"].T + layer["b_ih"]
        gh = h @ layer["w_hh"].T + layer["b_hh"]
        r = jax.nn.sigmoid(gi[:, :H] + gh[:, :H])
        z = jax.nn.sigmoid(gi[:, H:2 * H] + gh[:, H:2 * H])
        n = jnp.tanh(gi[:, 2 * H:] + r * gh[:, 2 * H:])
        h_new = (1.0 - z) * n + z * h
        new_h.append(h_new)
        x = h_new
    logits = x @ params["out_w"].T + params["out_b"]
    return jax.nn.log_softmax(logits, axis=-1), jnp.stack(new_h, axis=0)


# ----------------------------------------------------------------------------
if __name__ == "__main__":
    HIDDEN = 32
    OUTPUT = 64
    NLAYERS = 2
    BSZ = 8        # fill the 8-sublane vreg (perf feedback: batch >= 8)

    key = jax.random.PRNGKey(0)
    pkey, tkey = jax.random.split(key)
    params = init_params(pkey, HIDDEN, OUTPUT, NLAYERS)
    prepared = prepare_params(params, HIDDEN, OUTPUT)

    tokens = jax.random.randint(tkey, (BSZ,), 0, OUTPUT, dtype=jnp.int32)
    hidden0 = jnp.zeros((NLAYERS, BSZ, HIDDEN), jnp.float32)    # initHidden

    log_probs, new_hidden = decoder_rnn_forward(prepared, tokens, hidden0)
    jax.block_until_ready((log_probs, new_hidden))

    ref_lp, ref_h = reference_forward(params, tokens, hidden0)

    assert log_probs.shape == (BSZ, OUTPUT)
    assert new_hidden.shape == (NLAYERS, BSZ, HIDDEN)
    assert bool(jnp.all(jnp.isfinite(log_probs)))
    assert bool(jnp.allclose(jnp.sum(jnp.exp(log_probs), axis=-1), 1.0, atol=1e-4))
    assert bool(jnp.allclose(log_probs, ref_lp, atol=1e-4, rtol=1e-4))
    assert bool(jnp.allclose(new_hidden, ref_h, atol=1e-4, rtol=1e-4))

    print("KERNEL_OK")
</pallas_src>

<mosaic_0001>
module attributes {stable_mosaic.version = 11 : i64} {
  func.func @decoder_step_kernel(%arg0: memref<8xi32, #tpu.memory_space<smem>>, %arg1: memref<64x32xf32, #tpu.memory_space<vmem>>, %arg2: memref<2x8x32xf32, #tpu.memory_space<vmem>>, %arg3: memref<6x32x32xf32, #tpu.memory_space<vmem>>, %arg4: memref<6x32x32xf32, #tpu.memory_space<vmem>>, %arg5: memref<6x1x32xf32, #tpu.memory_space<vmem>>, %arg6: memref<6x1x32xf32, #tpu.memory_space<vmem>>, %arg7: memref<32x128xf32, #tpu.memory_space<vmem>>, %arg8: memref<1x128xf32, #tpu.memory_space<vmem>>, %arg9: memref<8x128xf32, #tpu.memory_space<vmem>>, %arg10: memref<2x8x32xf32, #tpu.memory_space<vmem>>, %arg11: memref<8x32xf32, #tpu.memory_space<vmem>>) attributes {dimension_semantics = [], scalar_prefetch = 0 : i64, scratch_operands = 1 : i64, tpu.core_type = #tpu.core_type<tc>} {
    %c0 = arith.constant 0 : index
    %0 = memref.load %arg0[%c0] : memref<8xi32, #tpu.memory_space<smem>>
    %1 = arith.index_cast %0 : i32 to index
    %c0_0 = arith.constant 0 : index
    %2 = vector.load %arg1[%1, %c0_0] : memref<64x32xf32, #tpu.memory_space<vmem>>, vector<1x32xf32>
    %c0_1 = arith.constant 0 : index
    %c0_2 = arith.constant 0 : index
    %3 = vector.load %arg11[%c0_1, %c0_2] : memref<8x32xf32, #tpu.memory_space<vmem>>, vector<1x32xf32>
    tpu.vector_store %arg11[%c0_1, %c0_2], %2 {strides = array<i32>} : memref<8x32xf32, #tpu.memory_space<vmem>>, vector<1x32xf32>,
    %c1 = arith.constant 1 : index
    %4 = memref.load %arg0[%c1] : memref<8xi32, #tpu.memory_space<smem>>
    %5 = arith.index_cast %4 : i32 to index
    %c0_3 = arith.constant 0 : index
    %6 = vector.load %arg1[%5, %c0_3] : memref<64x32xf32, #tpu.memory_space<vmem>>, vector<1x32xf32>
    %c1_4 = arith.constant 1 : index
    %c0_5 = arith.constant 0 : index
    %7 = vector.load %arg11[%c1_4, %c0_5] : memref<8x32xf32, #tpu.memory_space<vmem>>, vector<1x32xf32>
    tpu.vector_store %arg11[%c1_4, %c0_5], %6 {strides = array<i32>} : memref<8x32xf32, #tpu.memory_space<vmem>>, vector<1x32xf32>,
    %c2 = arith.constant 2 : index
    %8 = memref.load %arg0[%c2] : memref<8xi32, #tpu.memory_space<smem>>
    %9 = arith.index_cast %8 : i32 to index
    %c0_6 = arith.constant 0 : index
    %10 = vector.load %arg1[%9, %c0_6] : memref<64x32xf32, #tpu.memory_space<vmem>>, vector<1x32xf32>
    %c2_7 = arith.constant 2 : index
    %c0_8 = arith.constant 0 : index
    %11 = vector.load %arg11[%c2_7, %c0_8] : memref<8x32xf32, #tpu.memory_space<vmem>>, vector<1x32xf32>
    tpu.vector_store %arg11[%c2_7, %c0_8], %10 {strides = array<i32>} : memref<8x32xf32, #tpu.memory_space<vmem>>, vector<1x32xf32>,
    %c3 = arith.constant 3 : index
    %12 = memref.load %arg0[%c3] : memref<8xi32, #tpu.memory_space<smem>>
    %13 = arith.index_cast %12 : i32 to index
    %c0_9 = arith.constant 0 : index
    %14 = vector.load %arg1[%13, %c0_9] : memref<64x32xf32, #tpu.memory_space<vmem>>, vector<1x32xf32>
    %c3_10 = arith.constant 3 : index
    %c0_11 = arith.constant 0 : index
    %15 = vector.load %arg11[%c3_10, %c0_11] : memref<8x32xf32, #tpu.memory_space<vmem>>, vector<1x32xf32>
    tpu.vector_store %arg11[%c3_10, %c0_11], %14 {strides = array<i32>} : memref<8x32xf32, #tpu.memory_space<vmem>>, vector<1x32xf32>,
    %c4 = arith.constant 4 : index
    %16 = memref.load %arg0[%c4] : memref<8xi32, #tpu.memory_space<smem>>
    %17 = arith.index_cast %16 : i32 to index
    %c0_12 = arith.constant 0 : index
    %18 = vector.load %arg1[%17, %c0_12] : memref<64x32xf32, #tpu.memory_space<vmem>>, vector<1x32xf32>
    %c4_13 = arith.constant 4 : index
    %c0_14 = arith.constant 0 : index
    %19 = vector.load %arg11[%c4_13, %c0_14] : memref<8x32xf32, #tpu.memory_space<vmem>>, vector<1x32xf32>
    tpu.vector_store %arg11[%c4_13, %c0_14], %18 {strides = array<i32>} : memref<8x32xf32, #tpu.memory_space<vmem>>, vector<1x32xf32>,
    %c5 = arith.constant 5 : index
    %20 = memref.load %arg0[%c5] : memref<8xi32, #tpu.memory_space<smem>>
    %21 = arith.index_cast %20 : i32 to index
    %c0_15 = arith.constant 0 : index
    %22 = vector.load %arg1[%21, %c0_15] : memref<64x32xf32, #tpu.memory_space<vmem>>, vector<1x32xf32>
    %c5_16 = arith.constant 5 : index
    %c0_17 = arith.constant 0 : index
    %23 = vector.load %arg11[%c5_16, %c0_17] : memref<8x32xf32, #tpu.memory_space<vmem>>, vector<1x32xf32>
    tpu.vector_store %arg11[%c5_16, %c0_17], %22 {strides = array<i32>} : memref<8x32xf32, #tpu.memory_space<vmem>>, vector<1x32xf32>,
    %c6 = arith.constant 6 : index
    %24 = memref.load %arg0[%c6] : memref<8xi32, #tpu.memory_space<smem>>
    %25 = arith.index_cast %24 : i32 to index
    %c0_18 = arith.constant 0 : index
    %26 = vector.load %arg1[%25, %c0_18] : memref<64x32xf32, #tpu.memory_space<vmem>>, vector<1x32xf32>
    %c6_19 = arith.constant 6 : index
    %c0_20 = arith.constant 0 : index
    %27 = vector.load %arg11[%c6_19, %c0_20] : memref<8x32xf32, #tpu.memory_space<vmem>>, vector<1x32xf32>
    tpu.vector_store %arg11[%c6_19, %c0_20], %26 {strides = array<i32>} : memref<8x32xf32, #tpu.memory_space<vmem>>, vector<1x32xf32>,
    %c7 = arith.constant 7 : index
    %28 = memref.load %arg0[%c7] : memref<8xi32, #tpu.memory_space<smem>>
    %29 = arith.index_cast %28 : i32 to index
    %c0_21 = arith.constant 0 : index
    %30 = vector.load %arg1[%29, %c0_21] : memref<64x32xf32, #tpu.memory_space<vmem>>, vector<1x32xf32>
    %c7_22 = arith.constant 7 : index
    %c0_23 = arith.constant 0 : index
    %31 = vector.load %arg11[%c7_22, %c0_23] : memref<8x32xf32, #tpu.memory_space<vmem>>, vector<1x32xf32>
    tpu.vector_store %arg11[%c7_22, %c0_23], %30 {strides = array<i32>} : memref<8x32xf32, #tpu.memory_space<vmem>>, vector<1x32xf32>,
    %c0_24 = arith.constant 0 : index
    %c0_25 = arith.constant 0 : index
    %32 = vector.load %arg11[%c0_24, %c0_25] : memref<8x32xf32, #tpu.memory_space<vmem>>, vector<8x32xf32>
    %c0_26 = arith.constant 0 : index
    %c0_27 = arith.constant 0 : index
    %c0_28 = arith.constant 0 : index
    %33 = vector.load %arg2[%c0_26, %c0_27, %c0_28] : memref<2x8x32xf32, #tpu.memory_space<vmem>>, vector<1x8x32xf32>
    %34 = vector.shape_cast %33 : vector<1x8x32xf32> to vector<8x32xf32>
    %c0_29 = arith.constant 0 : index
    %c0_30 = arith.constant 0 : index
    %c0_31 = arith.constant 0 : index
    %35 = vector.load %arg3[%c0_29, %c0_30, %c0_31] : memref<6x32x32xf32, #tpu.memory_space<vmem>>, vector<1x32x32xf32>
    %36 = vector.shape_cast %35 : vector<1x32x32xf32> to vector<32x32xf32>
    %cst = arith.constant dense<0.000000e+00> : vector<8x32xf32>
    %37 = tpu.matmul %32, %36, %cst {dimension_numbers = #tpu.dot_dimension_numbers<[1], [0], [0], [1], [0, 0, 1, 1], [], []>} : vector<8x32xf32>, vector<32x32xf32>, vector<8x32xf32> -> vector<8x32xf32>
    %c0_32 = arith.constant 0 : index
    %c0_33 = arith.constant 0 : index
    %c0_34 = arith.constant 0 : index
    %38 = vector.load %arg5[%c0_32, %c0_33, %c0_34] : memref<6x1x32xf32, #tpu.memory_space<vmem>>, vector<1x1x32xf32>
    %39 = vector.shape_cast %38 : vector<1x1x32xf32> to vector<1x32xf32>
    %40 = vector.broadcast %39 : vector<1x32xf32> to vector<8x32xf32>
    %41 = arith.addf %37, %40 : vector<8x32xf32>
    %c1_35 = arith.constant 1 : index
    %c0_36 = arith.constant 0 : index
    %c0_37 = arith.constant 0 : index
    %42 = vector.load %arg3[%c1_35, %c0_36, %c0_37] : memref<6x32x32xf32, #tpu.memory_space<vmem>>, vector<1x32x32xf32>
    %43 = vector.shape_cast %42 : vector<1x32x32xf32> to vector<32x32xf32>
    %cst_38 = arith.constant dense<0.000000e+00> : vector<8x32xf32>
    %44 = tpu.matmul %32, %43, %cst_38 {dimension_numbers = #tpu.dot_dimension_numbers<[1], [0], [0], [1], [0, 0, 1, 1], [], []>} : vector<8x32xf32>, vector<32x32xf32>, vector<8x32xf32> -> vector<8x32xf32>
    %c1_39 = arith.constant 1 : index
    %c0_40 = arith.constant 0 : index
    %c0_41 = arith.constant 0 : index
    %45 = vector.load %arg5[%c1_39, %c0_40, %c0_41] : memref<6x1x32xf32, #tpu.memory_space<vmem>>, vector<1x1x32xf32>
    %46 = vector.shape_cast %45 : vector<1x1x32xf32> to vector<1x32xf32>
    %47 = vector.broadcast %46 : vector<1x32xf32> to vector<8x32xf32>
    %48 = arith.addf %44, %47 : vector<8x32xf32>
    %c2_42 = arith.constant 2 : index
    %c0_43 = arith.constant 0 : index
    %c0_44 = arith.constant 0 : index
    %49 = vector.load %arg3[%c2_42, %c0_43, %c0_44] : memref<6x32x32xf32, #tpu.memory_space<vmem>>, vector<1x32x32xf32>
    %50 = vector.shape_cast %49 : vector<1x32x32xf32> to vector<32x32xf32>
    %cst_45 = arith.constant dense<0.000000e+00> : vector<8x32xf32>
    %51 = tpu.matmul %32, %50, %cst_45 {dimension_numbers = #tpu.dot_dimension_numbers<[1], [0], [0], [1], [0, 0, 1, 1], [], []>} : vector<8x32xf32>, vector<32x32xf32>, vector<8x32xf32> -> vector<8x32xf32>
    %c2_46 = arith.constant 2 : index
    %c0_47 = arith.constant 0 : index
    %c0_48 = arith.constant 0 : index
    %52 = vector.load %arg5[%c2_46, %c0_47, %c0_48] : memref<6x1x32xf32, #tpu.memory_space<vmem>>, vector<1x1x32xf32>
    %53 = vector.shape_cast %52 : vector<1x1x32xf32> to vector<1x32xf32>
    %54 = vector.broadcast %53 : vector<1x32xf32> to vector<8x32xf32>
    %55 = arith.addf %51, %54 : vector<8x32xf32>
    %c0_49 = arith.constant 0 : index
    %c0_50 = arith.constant 0 : index
    %c0_51 = arith.constant 0 : index
    %56 = vector.load %arg4[%c0_49, %c0_50, %c0_51] : memref<6x32x32xf32, #tpu.memory_space<vmem>>, vector<1x32x32xf32>
    %57 = vector.shape_cast %56 : vector<1x32x32xf32> to vector<32x32xf32>
    %cst_52 = arith.constant dense<0.000000e+00> : vector<8x32xf32>
    %58 = tpu.matmul %34, %57, %cst_52 {dimension_numbers = #tpu.dot_dimension_numbers<[1], [0], [0], [1], [0, 0, 1, 1], [], []>} : vector<8x32xf32>, vector<32x32xf32>, vector<8x32xf32> -> vector<8x32xf32>
    %c0_53 = arith.constant 0 : index
    %c0_54 = arith.constant 0 : index
    %c0_55 = arith.constant 0 : index
    %59 = vector.load %arg6[%c0_53, %c0_54, %c0_55] : memref<6x1x32xf32, #tpu.memory_space<vmem>>, vector<1x1x32xf32>
    %60 = vector.shape_cast %59 : vector<1x1x32xf32> to vector<1x32xf32>
    %61 = vector.broadcast %60 : vector<1x32xf32> to vector<8x32xf32>
    %62 = arith.addf %58, %61 : vector<8x32xf32>
    %c1_56 = arith.constant 1 : index
    %c0_57 = arith.constant 0 : index
    %c0_58 = arith.constant 0 : index
    %63 = vector.load %arg4[%c1_56, %c0_57, %c0_58] : memref<6x32x32xf32, #tpu.memory_space<vmem>>, vector<1x32x32xf32>
    %64 = vector.shape_cast %63 : vector<1x32x32xf32> to vector<32x32xf32>
    %cst_59 = arith.constant dense<0.000000e+00> : vector<8x32xf32>
    %65 = tpu.matmul %34, %64, %cst_59 {dimension_numbers = #tpu.dot_dimension_numbers<[1], [0], [0], [1], [0, 0, 1, 1], [], []>} : vector<8x32xf32>, vector<32x32xf32>, vector<8x32xf32> -> vector<8x32xf32>
    %c1_60 = arith.constant 1 : index
    %c0_61 = arith.constant 0 : index
    %c0_62 = arith.constant 0 : index
    %66 = vector.load %arg6[%c1_60, %c0_61, %c0_62] : memref<6x1x32xf32, #tpu.memory_space<vmem>>, vector<1x1x32xf32>
    %67 = vector.shape_cast %66 : vector<1x1x32xf32> to vector<1x32xf32>
    %68 = vector.broadcast %67 : vector<1x32xf32> to vector<8x32xf32>
    %69 = arith.addf %65, %68 : vector<8x32xf32>
    %c2_63 = arith.constant 2 : index
    %c0_64 = arith.constant 0 : index
    %c0_65 = arith.constant 0 : index
    %70 = vector.load %arg4[%c2_63, %c0_64, %c0_65] : memref<6x32x32xf32, #tpu.memory_space<vmem>>, vector<1x32x32xf32>
    %71 = vector.shape_cast %70 : vector<1x32x32xf32> to vector<32x32xf32>
    %cst_66 = arith.constant dense<0.000000e+00> : vector<8x32xf32>
    %72 = tpu.matmul %34, %71, %cst_66 {dimension_numbers = #tpu.dot_dimension_numbers<[1], [0], [0], [1], [0, 0, 1, 1], [], []>} : vector<8x32xf32>, vector<32x32xf32>, vector<8x32xf32> -> vector<8x32xf32>
    %c2_67 = arith.constant 2 : index
    %c0_68 = arith.constant 0 : index
    %c0_69 = arith.constant 0 : index
    %73 = vector.load %arg6[%c2_67, %c0_68, %c0_69] : memref<6x1x32xf32, #tpu.memory_space<vmem>>, vector<1x1x32xf32>
    %74 = vector.shape_cast %73 : vector<1x1x32xf32> to vector<1x32xf32>
    %75 = vector.broadcast %74 : vector<1x32xf32> to vector<8x32xf32>
    %76 = arith.addf %72, %75 : vector<8x32xf32>
    %77 = arith.addf %41, %62 : vector<8x32xf32>
    %78 = arith.negf %77 : vector<8x32xf32>
    %79 = math.exp %78 : vector<8x32xf32>
    %cst_70 = arith.constant 1.000000e+00 : f32
    %80 = vector.broadcast %cst_70 : f32 to vector<8x32xf32>
    %81 = arith.addf %80, %79 : vector<8x32xf32>
    %82 = arith.divf %80, %81 : vector<8x32xf32>
    %83 = arith.addf %48, %69 : vector<8x32xf32>
    %84 = arith.negf %83 : vector<8x32xf32>
    %85 = math.exp %84 : vector<8x32xf32>
    %cst_71 = arith.constant 1.000000e+00 : f32
    %86 = vector.broadcast %cst_71 : f32 to vector<8x32xf32>
    %87 = arith.addf %86, %85 : vector<8x32xf32>
    %88 = arith.divf %86, %87 : vector<8x32xf32>
    %89 = arith.mulf %82, %76 : vector<8x32xf32>
    %90 = arith.addf %55, %89 : vector<8x32xf32>
    %91 = math.tanh %90 : vector<8x32xf32>
    %cst_72 = arith.constant 1.000000e+00 : f32
    %92 = vector.broadcast %cst_72 : f32 to vector<8x32xf32>
    %93 = arith.subf %92, %88 : vector<8x32xf32>
    %94 = arith.mulf %93, %91 : vector<8x32xf32>
    %95 = arith.mulf %88, %34 : vector<8x32xf32>
    %96 = arith.addf %94, %95 : vector<8x32xf32>
    %c0_73 = arith.constant 0 : index
    %c0_74 = arith.constant 0 : index
    %c0_75 = arith.constant 0 : index
    %97 = vector.load %arg10[%c0_73, %c0_74, %c0_75] : memref<2x8x32xf32, #tpu.memory_space<vmem>>, vector<1x8x32xf32>
    %98 = vector.shape_cast %97 : vector<1x8x32xf32> to vector<8x32xf32>
    %99 = vector.shape_cast %96 : vector<8x32xf32> to vector<1x8x32xf32>
    tpu.vector_store %arg10[%c0_73, %c0_74, %c0_75], %99 {strides = array<i32>} : memref<2x8x32xf32, #tpu.memory_space<vmem>>, vector<1x8x32xf32>,
    %c1_76 = arith.constant 1 : index
    %c0_77 = arith.constant 0 : index
    %c0_78 = arith.constant 0 : index
    %100 = vector.load %arg2[%c1_76, %c0_77, %c0_78] : memref<2x8x32xf32, #tpu.memory_space<vmem>>, vector<1x8x32xf32>
    %101 = vector.shape_cast %100 : vector<1x8x32xf32> to vector<8x32xf32>
    %c3_79 = arith.constant 3 : index
    %c0_80 = arith.constant 0 : index
    %c0_81 = arith.constant 0 : index
    %102 = vector.load %arg3[%c3_79, %c0_80, %c0_81] : memref<6x32x32xf32, #tpu.memory_space<vmem>>, vector<1x32x32xf32>
    %103 = vector.shape_cast %102 : vector<1x32x32xf32> to vector<32x32xf32>
    %cst_82 = arith.constant dense<0.000000e+00> : vector<8x32xf32>
    %104 = tpu.matmul %96, %103, %cst_82 {dimension_numbers = #tpu.dot_dimension_numbers<[1], [0], [0], [1], [0, 0, 1, 1], [], []>} : vector<8x32xf32>, vector<32x32xf32>, vector<8x32xf32> -> vector<8x32xf32>
    %c3_83 = arith.constant 3 : index
    %c0_84 = arith.constant 0 : index
    %c0_85 = arith.constant 0 : index
    %105 = vector.load %arg5[%c3_83, %c0_84, %c0_85] : memref<6x1x32xf32, #tpu.memory_space<vmem>>, vector<1x1x32xf32>
    %106 = vector.shape_cast %105 : vector<1x1x32xf32> to vector<1x32xf32>
    %107 = vector.broadcast %106 : vector<1x32xf32> to vector<8x32xf32>
    %108 = arith.addf %104, %107 : vector<8x32xf32>
    %c4_86 = arith.constant 4 : index
    %c0_87 = arith.constant 0 : index
    %c0_88 = arith.constant 0 : index
    %109 = vector.load %arg3[%c4_86, %c0_87, %c0_88] : memref<6x32x32xf32, #tpu.memory_space<vmem>>, vector<1x32x32xf32>
    %110 = vector.shape_cast %109 : vector<1x32x32xf32> to vector<32x32xf32>
    %cst_89 = arith.constant dense<0.000000e+00> : vector<8x32xf32>
    %111 = tpu.matmul %96, %110, %cst_89 {dimension_numbers = #tpu.dot_dimension_numbers<[1], [0], [0], [1], [0, 0, 1, 1], [], []>} : vector<8x32xf32>, vector<32x32xf32>, vector<8x32xf32> -> vector<8x32xf32>
    %c4_90 = arith.constant 4 : index
    %c0_91 = arith.constant 0 : index
    %c0_92 = arith.constant 0 : index
    %112 = vector.load %arg5[%c4_90, %c0_91, %c0_92] : memref<6x1x32xf32, #tpu.memory_space<vmem>>, vector<1x1x32xf32>
    %113 = vector.shape_cast %112 : vector<1x1x32xf32> to vector<1x32xf32>
    %114 = vector.broadcast %113 : vector<1x32xf32> to vector<8x32xf32>
    %115 = arith.addf %111, %114 : vector<8x32xf32>
    %c5_93 = arith.constant 5 : index
    %c0_94 = arith.constant 0 : index
    %c0_95 = arith.constant 0 : index
    %116 = vector.load %arg3[%c5_93, %c0_94, %c0_95] : memref<6x32x32xf32, #tpu.memory_space<vmem>>, vector<1x32x32xf32>
    %117 = vector.shape_cast %116 : vector<1x32x32xf32> to vector<32x32xf32>
    %cst_96 = arith.constant dense<0.000000e+00> : vector<8x32xf32>
    %118 = tpu.matmul %96, %117, %cst_96 {dimension_numbers = #tpu.dot_dimension_numbers<[1], [0], [0], [1], [0, 0, 1, 1], [], []>} : vector<8x32xf32>, vector<32x32xf32>, vector<8x32xf32> -> vector<8x32xf32>
    %c5_97 = arith.constant 5 : index
    %c0_98 = arith.constant 0 : index
    %c0_99 = arith.constant 0 : index
    %119 = vector.load %arg5[%c5_97, %c0_98, %c0_99] : memref<6x1x32xf32, #tpu.memory_space<vmem>>, vector<1x1x32xf32>
    %120 = vector.shape_cast %119 : vector<1x1x32xf32> to vector<1x32xf32>
    %121 = vector.broadcast %120 : vector<1x32xf32> to vector<8x32xf32>
    %122 = arith.addf %118, %121 : vector<8x32xf32>
    %c3_100 = arith.constant 3 : index
    %c0_101 = arith.constant 0 : index
    %c0_102 = arith.constant 0 : index
    %123 = vector.load %arg4[%c3_100, %c0_101, %c0_102] : memref<6x32x32xf32, #tpu.memory_space<vmem>>, vector<1x32x32xf32>
    %124 = vector.shape_cast %123 : vector<1x32x32xf32> to vector<32x32xf32>
    %cst_103 = arith.constant dense<0.000000e+00> : vector<8x32xf32>
    %125 = tpu.matmul %101, %124, %cst_103 {dimension_numbers = #tpu.dot_dimension_numbers<[1], [0], [0], [1], [0, 0, 1, 1], [], []>} : vector<8x32xf32>, vector<32x32xf32>, vector<8x32xf32> -> vector<8x32xf32>
    %c3_104 = arith.constant 3 : index
    %c0_105 = arith.constant 0 : index
    %c0_106 = arith.constant 0 : index
    %126 = vector.load %arg6[%c3_104, %c0_105, %c0_106] : memref<6x1x32xf32, #tpu.memory_space<vmem>>, vector<1x1x32xf32>
    %127 = vector.shape_cast %126 : vector<1x1x32xf32> to vector<1x32xf32>
    %128 = vector.broadcast %127 : vector<1x32xf32> to vector<8x32xf32>
    %129 = arith.addf %125, %128 : vector<8x32xf32>
    %c4_107 = arith.constant 4 : index
    %c0_108 = arith.constant 0 : index
    %c0_109 = arith.constant 0 : index
    %130 = vector.load %arg4[%c4_107, %c0_108, %c0_109] : memref<6x32x32xf32, #tpu.memory_space<vmem>>, vector<1x32x32xf32>
    %131 = vector.shape_cast %130 : vector<1x32x32xf32> to vector<32x32xf32>
    %cst_110 = arith.constant dense<0.000000e+00> : vector<8x32xf32>
    %132 = tpu.matmul %101, %131, %cst_110 {dimension_numbers = #tpu.dot_dimension_numbers<[1], [0], [0], [1], [0, 0, 1, 1], [], []>} : vector<8x32xf32>, vector<32x32xf32>, vector<8x32xf32> -> vector<8x32xf32>
    %c4_111 = arith.constant 4 : index
    %c0_112 = arith.constant 0 : index
    %c0_113 = arith.constant 0 : index
    %133 = vector.load %arg6[%c4_111, %c0_112, %c0_113] : memref<6x1x32xf32, #tpu.memory_space<vmem>>, vector<1x1x32xf32>
    %134 = vector.shape_cast %133 : vector<1x1x32xf32> to vector<1x32xf32>
    %135 = vector.broadcast %134 : vector<1x32xf32> to vector<8x32xf32>
    %136 = arith.addf %132, %135 : vector<8x32xf32>
    %c5_114 = arith.constant 5 : index
    %c0_115 = arith.constant 0 : index
    %c0_116 = arith.constant 0 : index
    %137 = vector.load %arg4[%c5_114, %c0_115, %c0_116] : memref<6x32x32xf32, #tpu.memory_space<vmem>>, vector<1x32x32xf32>
    %138 = vector.shape_cast %137 : vector<1x32x32xf32> to vector<32x32xf32>
    %cst_117 = arith.constant dense<0.000000e+00> : vector<8x32xf32>
    %139 = tpu.matmul %101, %138, %cst_117 {dimension_numbers = #tpu.dot_dimension_numbers<[1], [0], [0], [1], [0, 0, 1, 1], [], []>} : vector<8x32xf32>, vector<32x32xf32>, vector<8x32xf32> -> vector<8x32xf32>
    %c5_118 = arith.constant 5 : index
    %c0_119 = arith.constant 0 : index
    %c0_120 = arith.constant 0 : index
    %140 = vector.load %arg6[%c5_118, %c0_119, %c0_120] : memref<6x1x32xf32, #tpu.memory_space<vmem>>, vector<1x1x32xf32>
    %141 = vector.shape_cast %140 : vector<1x1x32xf32> to vector<1x32xf32>
    %142 = vector.broadcast %141 : vector<1x32xf32> to vector<8x32xf32>
    %143 = arith.addf %139, %142 : vector<8x32xf32>
    %144 = arith.addf %108, %129 : vector<8x32xf32>
    %145 = arith.negf %144 : vector<8x32xf32>
    %146 = math.exp %145 : vector<8x32xf32>
    %cst_121 = arith.constant 1.000000e+00 : f32
    %147 = vector.broadcast %cst_121 : f32 to vector<8x32xf32>
    %148 = arith.addf %147, %146 : vector<8x32xf32>
    %149 = arith.divf %147, %148 : vector<8x32xf32>
    %150 = arith.addf %115, %136 : vector<8x32xf32>
    %151 = arith.negf %150 : vector<8x32xf32>
    %152 = math.exp %151 : vector<8x32xf32>
    %cst_122 = arith.constant 1.000000e+00 : f32
    %153 = vector.broadcast %cst_122 : f32 to vector<8x32xf32>
    %154 = arith.addf %153, %152 : vector<8x32xf32>
    %155 = arith.divf %153, %154 : vector<8x32xf32>
    %156 = arith.mulf %149, %143 : vector<8x32xf32>
    %157 = arith.addf %122, %156 : vector<8x32xf32>
    %158 = math.tanh %157 : vector<8x32xf32>
    %cst_123 = arith.constant 1.000000e+00 : f32
    %159 = vector.broadcast %cst_123 : f32 to vector<8x32xf32>
    %160 = arith.subf %159, %155 : vector<8x32xf32>
    %161 = arith.mulf %160, %158 : vector<8x32xf32>
    %162 = arith.mulf %155, %101 : vector<8x32xf32>
    %163 = arith.addf %161, %162 : vector<8x32xf32>
    %c1_124 = arith.constant 1 : index
    %c0_125 = arith.constant 0 : index
    %c0_126 = arith.constant 0 : index
    %164 = vector.load %arg10[%c1_124, %c0_125, %c0_126] : memref<2x8x32xf32, #tpu.memory_space<vmem>>, vector<1x8x32xf32>
    %165 = vector.shape_cast %164 : vector<1x8x32xf32> to vector<8x32xf32>
    %166 = vector.shape_cast %163 : vector<8x32xf32> to vector<1x8x32xf32>
    tpu.vector_store %arg10[%c1_124, %c0_125, %c0_126], %166 {strides = array<i32>} : memref<2x8x32xf32, #tpu.memory_space<vmem>>, vector<1x8x32xf32>,
    %c0_127 = arith.constant 0 : index
    %c0_128 = arith.constant 0 : index
    %167 = vector.load %arg7[%c0_127, %c0_128] : memref<32x128xf32, #tpu.memory_space<vmem>>, vector<32x128xf32>
    %cst_129 = arith.constant dense<0.000000e+00> : vector<8x128xf32>
    %168 = tpu.matmul %163, %167, %cst_129 {dimension_numbers = #tpu.dot_dimension_numbers<[1], [0], [0], [1], [0, 0, 1, 1], [], []>} : vector<8x32xf32>, vector<32x128xf32>, vector<8x128xf32> -> vector<8x128xf32>
    %c0_130 = arith.constant 0 : index
    %c0_131 = arith.constant 0 : index
    %169 = vector.load %arg8[%c0_130, %c0_131] : memref<1x128xf32, #tpu.memory_space<vmem>>, vector<1x128xf32>
    %170 = vector.broadcast %169 : vector<1x128xf32> to vector<8x128xf32>
    %171 = arith.addf %168, %170 : vector<8x128xf32>
    %cst_132 = arith.constant dense<0xFF800000> : vector<8xf32>
    %172 = vector.multi_reduction <maximumf>, %171, %cst_132 [1] : vector<8x128xf32> to vector<8xf32>
    %173 = vector.shape_cast %172 : vector<8xf32> to vector<8x1xf32>
    %174 = vector.broadcast %173 : vector<8x1xf32> to vector<8x128xf32>
    %175 = arith.subf %171, %174 : vector<8x128xf32>
    %176 = math.exp %175 : vector<8x128xf32>
    %cst_133 = arith.constant dense<0.000000e+00> : vector<8xf32>
    %177 = vector.multi_reduction <add>, %176, %cst_133 [1] : vector<8x128xf32> to vector<8xf32>
    %178 = vector.shape_cast %177 : vector<8xf32> to vector<8x1xf32>
    %179 = math.log %178 : vector<8x1xf32>
    %180 = vector.broadcast %179 : vector<8x1xf32> to vector<8x128xf32>
    %181 = arith.subf %175, %180 : vector<8x128xf32>
    %c0_134 = arith.constant 0 : index
    %c0_135 = arith.constant 0 : index
    %182 = vector.load %arg9[%c0_134, %c0_135] : memref<8x128xf32, #tpu.memory_space<vmem>>, vector<8x128xf32>
    tpu.vector_store %arg9[%c0_134, %c0_135], %181 {strides = array<i32>} : memref<8x128xf32, #tpu.memory_space<vmem>>, vector<8x128xf32>,
    return
  }
}

</mosaic_0001>

<llo_original>
// kernel: tpu_custom_call.1
$region0: #{tpu_custom_call.1}
  #allocation0 [shape = 'u32[]', space=smem, size = 0x4, offset = 0x4, fixed_abs, tag = 'smem constant byte address 0x4 - core index']
  #allocation1 [shape = 'u32[144,128]{1,0:T(1,128)}', space=vmem, size = 0x12000, scoped, tag = 'internal scratch']
  #allocation2 [shape = 'f32[8,32]{1,0:T(8,128)}', space=vmem, size = 0x1000, scoped, tag = 'scratch operand']
  %s0 = inlined_call_operand.vmem [shape: s32[8], index: 0, kind: input, shape index: {}]
  %s1 = inlined_call_operand.vmem [shape: f32[64,32], index: 1, kind: input, shape index: {}]
  %s2 = inlined_call_operand.vmem [shape: f32[2,8,32], index: 2, kind: input, shape index: {}]
  %s3 = inlined_call_operand.hbm [shape: f32[6,32,32], index: 3, kind: input, shape index: {}]
  %s4 = inlined_call_operand.hbm [shape: f32[6,32,32], index: 4, kind: input, shape index: {}]
  %s5 = inlined_call_operand.vmem [shape: f32[6,1,32], index: 5, kind: input, shape index: {}]
  %s6 = inlined_call_operand.vmem [shape: f32[6,1,32], index: 6, kind: input, shape index: {}]
  %s7 = inlined_call_operand.vmem [shape: f32[32,128], index: 7, kind: input, shape index: {}]
  %s8 = inlined_call_operand.vmem [shape: f32[1,128], index: 8, kind: input, shape index: {}]
  %s9 = inlined_call_operand.hbm [shape: f32[8,128], index: 9, kind: output, shape index: {0}]
  %s10 = inlined_call_operand.hbm [shape: f32[2,8,32], index: 10, kind: output, shape index: {1}]
  %11 = xla_tuple %s9, %s10
  %s12 = sld [smem:[#allocation0]]
  $region66: #{tpu_custom_call.1} parent=0
    _
  %s14 = ssub.s32 1, %s12
  %s15 = scalar_select 0, %s14, %s12
  $region1: #{tpu_custom_call.1} parent=0
    #allocation3 [shape = 'u8[512]{0}', space=smem, size = 0x200, scoped, tag = 'input window, operand 0, single buffered']
    #allocation4 [shape = 's32[1]{0}', space=sflag, size = 0x4, scoped, tag = 'scoped memory for tpu_custom_call.1']
    #allocation5 [shape = 's32[1]{0}', space=sflag, size = 0x4, scoped, tag = 'scoped memory for tpu_custom_call.1']
    #allocation6 [shape = 's32[1]{0}', space=sflag, size = 0x4, scoped, tag = 'scoped memory for tpu_custom_call.1']
    #allocation7 [shape = 'u8[98304]{0}', space=vmem, size = 0x18000, scoped, tag = 'input window, operand 3, single buffered']
    #allocation8 [shape = 'u8[98304]{0}', space=vmem, size = 0x18000, scoped, tag = 'input window, operand 4, single buffered']
    #allocation9 [shape = 's32[1]{0}', space=sflag, size = 0x4, scoped, tag = 'scoped memory for tpu_custom_call.1']
    #allocation10 [shape = 'u8[4096]{0}', space=vmem, size = 0x1000, scoped, tag = 'output window, operand 0, single buffered']
    #allocation11 [shape = 'u8[8192]{0}', space=vmem, size = 0x2000, scoped, tag = 'output window, operand 1, single buffered']
    #allocation12 [shape = 's32[1]{0}', space=sflag, size = 0x4, scoped, tag = 'scoped memory for tpu_custom_call.1']
    %16 = vsyncpa [#allocation6], 0
    %17 = vsyncpa [#allocation4], 0
    %18 = vsyncpa [#allocation9], 0
    %19 = vsyncpa [#allocation5], 0
    %20 = vsyncpa [#allocation12], 0
    // Predicated region
    $region2: #{tpu_custom_call.1} parent=1 // pred_check
      _
    $region3: #{tpu_custom_call.1} parent=1 // pred_check_branch
      %22 = sbr.rel (0) target = $region5
    $region4: #{tpu_custom_call.1} parent=1 // pred_region
      %s24 = ssub.s32 16, 16
      %25 = vsyncadd [#allocation6], %s24
      %s27 = sshll.u32 %s0, 4
      %s28 = int_to_ptr.vmem [resolvable:$true] %s27
      %30 = dma.vmem_to_smem %s28, 16, [#allocation3], [#allocation6]
    $region5: #{tpu_custom_call.1} parent=1 // pred_fallthru
      _
    // Predicated region
    $region6: #{tpu_custom_call.1} parent=1 // pred_check
      _
    $region7: #{tpu_custom_call.1} parent=1 // pred_check_branch
      %32 = sbr.rel (0) target = $region9
    $region8: #{tpu_custom_call.1} parent=1 // pred_region
      _
    $region9: #{tpu_custom_call.1} parent=1 // pred_fallthru
      _
    // Predicated region
    $region10: #{tpu_custom_call.1} parent=1 // pred_check
      _
    $region11: #{tpu_custom_call.1} parent=1 // pred_check_branch
      %34 = sbr.rel (0) target = $region13
    $region12: #{tpu_custom_call.1} parent=1 // pred_region
      _
    $region13: #{tpu_custom_call.1} parent=1 // pred_fallthru
      _
    // Predicated region
    $region14: #{tpu_custom_call.1} parent=1 // pred_check
      _
    $region15: #{tpu_custom_call.1} parent=1 // pred_check_branch
      %36 = sbr.rel (0) target = $region17
    $region16: #{tpu_custom_call.1} parent=1 // pred_region
      %s38 = ssub.s32 3072, 3072
      %39 = vsyncadd [#allocation4], %s38
      %s40 = sshll.u32 [#allocation7], 4
      %s41 = int_to_ptr.vmem [resolvable:$true] %s40
      %46 = dma.hbm_to_vmem [thread:$0]  %s3, 3072, %s41, [#allocation4], 128, 128, 8
    $region17: #{tpu_custom_call.1} parent=1 // pred_fallthru
      _
    // Predicated region
    $region18: #{tpu_custom_call.1} parent=1 // pred_check
      _
    $region19: #{tpu_custom_call.1} parent=1 // pred_check_branch
      %48 = sbr.rel (0) target = $region21
    $region20: #{tpu_custom_call.1} parent=1 // pred_region
      %s50 = ssub.s32 3072, 3072
      %51 = vsyncadd [#allocation9], %s50
      %s52 = sshll.u32 [#allocation8], 4
      %s53 = int_to_ptr.vmem [resolvable:$true] %s52
      %58 = dma.hbm_to_vmem [thread:$0]  %s4, 3072, %s53, [#allocation9], 128, 128, 8
    $region21: #{tpu_custom_call.1} parent=1 // pred_fallthru
      _
    // Predicated region
    $region22: #{tpu_custom_call.1} parent=1 // pred_check
      _
    $region23: #{tpu_custom_call.1} parent=1 // pred_check_branch
      %60 = sbr.rel (0) target = $region25
    $region24: #{tpu_custom_call.1} parent=1 // pred_region
      _
    $region25: #{tpu_custom_call.1} parent=1 // pred_fallthru
      _
    // Predicated region
    $region26: #{tpu_custom_call.1} parent=1 // pred_check
      _
    $region27: #{tpu_custom_call.1} parent=1 // pred_check_branch
      %62 = sbr.rel (0) target = $region29
    $region28: #{tpu_custom_call.1} parent=1 // pred_region
      _
    $region29: #{tpu_custom_call.1} parent=1 // pred_fallthru
      _
    // Predicated region
    $region30: #{tpu_custom_call.1} parent=1 // pred_check
      _
    $region31: #{tpu_custom_call.1} parent=1 // pred_check_branch
      %64 = sbr.rel (0) target = $region33
    $region32: #{tpu_custom_call.1} parent=1 // pred_region
      _
    $region33: #{tpu_custom_call.1} parent=1 // pred_fallthru
      _
    // Predicated region
    $region34: #{tpu_custom_call.1} parent=1 // pred_check
      _
    $region35: #{tpu_custom_call.1} parent=1 // pred_check_branch
      %66 = sbr.rel (0) target = $region37
    $region36: #{tpu_custom_call.1} parent=1 // pred_region
      _
    $region37: #{tpu_custom_call.1} parent=1 // pred_fallthru
      _
    // Predicated region
    $region38: #{tpu_custom_call.1} parent=1 // pred_check
      _
    $region39: #{tpu_custom_call.1} parent=1 // pred_check_branch
      %68 = sbr.rel (0) target = $region41
    $region40: #{tpu_custom_call.1} parent=1 // pred_region
      %69 = dma.done [#allocation6], 16
    $region41: #{tpu_custom_call.1} parent=1 // pred_fallthru
      _
    // Predicated region
    $region42: #{tpu_custom_call.1} parent=1 // pred_check
      _
    $region43: #{tpu_custom_call.1} parent=1 // pred_check_branch
      %71 = sbr.rel (0) target = $region45
    $region44: #{tpu_custom_call.1} parent=1 // pred_region
      %72 = dma.done [#allocation4], 3072
    $region45: #{tpu_custom_call.1} parent=1 // pred_fallthru
      _
    // Predicated region
    $region46: #{tpu_custom_call.1} parent=1 // pred_check
      _
    $region47: #{tpu_custom_call.1} parent=1 // pred_check_branch
      %74 = sbr.rel (0) target = $region49
    $region48: #{tpu_custom_call.1} parent=1 // pred_region
      %75 = dma.done [#allocation9], 3072
    $region49: #{tpu_custom_call.1} parent=1 // pred_fallthru
      _
    %76 = sfence
    %s77 = sld [smem:[#allocation3]]
    %s78 = scalar_lea.vmem %s1, %s77
    %v79 = vld [vmem:[%s78] sm:$0x1]
    %vm80 = vcmask 253952
    %81 = vst.msk [vmem:[#allocation2] sm:$0x1] %vm80, %v79
    %s82 = sld [smem:[#allocation3 + $0x1]]
    %s83 = scalar_lea.vmem %s1, %s82
    %v84 = vld [vmem:[%s83] sm:$0x1]
    %85 = vst.msk [vmem:[#allocation2 + $0x1] sm:$0x1] %vm80, %v84
    %s86 = sld [smem:[#allocation3 + $0x2]]
    %s87 = scalar_lea.vmem %s1, %s86
    %v88 = vld [vmem:[%s87] sm:$0x1]
    %89 = vst.msk [vmem:[#allocation2 + $0x2] sm:$0x1] %vm80, %v88
    %s90 = sld [smem:[#allocation3 + $0x3]]
    %s91 = scalar_lea.vmem %s1, %s90
    %v92 = vld [vmem:[%s91] sm:$0x1]
    %93 = vst.msk [vmem:[#allocation2 + $0x3] sm:$0x1] %vm80, %v92
    %s94 = sld [smem:[#allocation3 + $0x4]]
    %s95 = scalar_lea.vmem %s1, %s94
    %v96 = vld [vmem:[%s95] sm:$0x1]
    %97 = vst.msk [vmem:[#allocation2 + $0x4] sm:$0x1] %vm80, %v96
    %s98 = sld [smem:[#allocation3 + $0x5]]
    %s99 = scalar_lea.vmem %s1, %s98
    %v100 = vld [vmem:[%s99] sm:$0x1]
    %101 = vst.msk [vmem:[#allocation2 + $0x5] sm:$0x1] %vm80, %v100
    %s102 = sld [smem:[#allocation3 + $0x6]]
    %s103 = scalar_lea.vmem %s1, %s102
    %v104 = vld [vmem:[%s103] sm:$0x1]
    %105 = vst.msk [vmem:[#allocation2 + $0x6] sm:$0x1] %vm80, %v104
    %s106 = sld [smem:[#allocation3 + $0x7]]
    %s107 = scalar_lea.vmem %s1, %s106
    %v108 = vld [vmem:[%s107] sm:$0x1]
    %109 = vst.msk [vmem:[#allocation2 + $0x7] sm:$0x1] %vm80, %v108
    %v110 = vld [vmem:[#allocation2] sm:$0xff]
    %v111 = vld [vmem:[%s2] sm:$0xff]
    %v112 = vld [vmem:[#allocation7] sm:$0xff]
    %v113 = vld [vmem:[#allocation7 + $0x8] sm:$0xff]
    %v114 = vld [vmem:[#allocation7 + $0x10] sm:$0xff]
    %v115 = vld [vmem:[#allocation7 + $0x18] sm:$0xff]
    %v116 = vld [vmem:[%s5] sm:$0x1]
    %v118 = vlaneseq
    %v119 = vshrl.u32 %v118, 7
    %v120 = vsub.s32 0, %v119
    %v121 = vrot.slane %v116, %v120
    %vm123 = vcmask 261120
    %v125 = vsel %vm123, %v110, 0
    %127 = vmatprep.subr.mxu0 0.0
    %128 = vmatpush1.msra.mxu0 0.0
    %129 = vmatprep.subr.mxu0 0.0
    %130 = vmatpush1.msra.mxu0 0.0
    %131 = vmatprep.subr.mxu0 0.0
    %132 = vmatpush1.msra.mxu0 0.0
    %133 = vmatprep.subr.mxu0 0.0
    %134 = vmatpush1.msra.mxu0 0.0
    %135 = vmatprep.subr.mxu0 0.0
    %136 = vmatpush1.msra.mxu0 0.0
    %137 = vmatprep.subr.mxu0 0.0
    %138 = vmatpush1.msra.mxu0 0.0
    %139 = vmatprep.subr.mxu0 0.0
    %140 = vmatpush1.msra.mxu0 0.0
    %141 = vmatprep.subr.mxu0 0.0
    %142 = vmatpush1.msra.mxu0 0.0
    %143 = vmatprep.subr.mxu0 0.0
    %144 = vmatpush1.msra.mxu0 0.0
    %145 = vmatprep.subr.mxu0 0.0
    %146 = vmatpush1.msra.mxu0 0.0
    %147 = vmatprep.subr.mxu0 0.0
    %148 = vmatpush1.msra.mxu0 0.0
    %149 = vmatprep.subr.mxu0 0.0
    %150 = vmatpush1.msra.mxu0 0.0
    %151 = vmatprep.subr.mxu0 0.0
    %152 = vmatpush1.msra.mxu0 %v115
    %153 = vmatprep.subr.mxu0 0.0
    %154 = vmatpush1.msra.mxu0 %v114
    %155 = vmatprep.subr.mxu0 0.0
    %156 = vmatpush1.msra.mxu0 %v113
    %157 = vmatprep.subr.mxu0 0.0
    %158 = vmatpush1.msra.mxu0 %v112
    %159 = vmatprep.subr.mxu0 0.0
    %160 = vmatpush2.msra.mxu0 0.0
    %161 = vmatprep.subr.mxu0 0.0
    %162 = vmatpush2.msra.mxu0 0.0
    %163 = vmatprep.subr.mxu0 0.0
    %164 = vmatpush2.msra.mxu0 0.0
    %165 = vmatprep.subr.mxu0 0.0
    %166 = vmatpush2.msra.mxu0 0.0
    %167 = vmatprep.subr.mxu0 0.0
    %168 = vmatpush2.msra.mxu0 0.0
    %169 = vmatprep.subr.mxu0 0.0
    %170 = vmatpush2.msra.mxu0 0.0
    %171 = vmatprep.subr.mxu0 0.0
    %172 = vmatpush2.msra.mxu0 0.0
    %173 = vmatprep.subr.mxu0 0.0
    %174 = vmatpush2.msra.mxu0 0.0
    %175 = vmatprep.subr.mxu0 0.0
    %176 = vmatpush2.msra.mxu0 0.0
    %177 = vmatprep.subr.mxu0 0.0
    %178 = vmatpush2.msra.mxu0 0.0
    %179 = vmatprep.subr.mxu0 0.0
    %180 = vmatpush2.msra.mxu0 0.0
    %181 = vmatprep.subr.mxu0 0.0
    %182 = vmatpush2.msra.mxu0 0.0
    %183 = vmatprep.subr.mxu0 0.0
    %184 = vmatpush2.msra.mxu0 0.0
    %185 = vmatprep.subr.mxu0 0.0
    %186 = vmatpush2.msra.mxu0 0.0
    %187 = vmatprep.subr.mxu0 0.0
    %188 = vmatpush2.msra.mxu0 0.0
    %189 = vmatprep.subr.mxu0 0.0
    %190 = vmatpush2.msra.mxu0 0.0
    %191 = vmatprep.mubr.f32.mxu0 0.0
    %192 = vmatmul.mubr.f32.gmra.mxu0 %v125
    %v193 = vpop.f32.mrf.mxu0
    %v194 = vadd.f32 %v121, %v193
    %v195 = vpop.f32.mrf.mxu0
    %196 = vdwg.mxu0
    %s197 = scalar_lea.vmem [#allocation7], 32
    %v198 = vld [vmem:[%s197] sm:$0xff]
    %v199 = vld [vmem:[%s197 + $0x8] sm:$0xff]
    %v200 = vld [vmem:[%s197 + $0x10] sm:$0xff]
    %v201 = vld [vmem:[%s197 + $0x18] sm:$0xff]
    %s202 = scalar_lea.vmem %s5, 1
    %v203 = vld [vmem:[%s202] sm:$0x1]
    %v205 = vlaneseq
    %v206 = vshrl.u32 %v205, 7
    %v207 = vsub.s32 0, %v206
    %v208 = vrot.slane %v203, %v207
    %210 = vmatprep.subr.mxu0 0.0
    %211 = vmatpush1.msra.mxu0 0.0
    %212 = vmatprep.subr.mxu0 0.0
    %213 = vmatpush1.msra.mxu0 0.0
    %214 = vmatprep.subr.mxu0 0.0
    %215 = vmatpush1.msra.mxu0 0.0
    %216 = vmatprep.subr.mxu0 0.0
    %217 = vmatpush1.msra.mxu0 0.0
    %218 = vmatprep.subr.mxu0 0.0
    %219 = vmatpush1.msra.mxu0 0.0
    %220 = vmatprep.subr.mxu0 0.0
    %221 = vmatpush1.msra.mxu0 0.0
    %222 = vmatprep.subr.mxu0 0.0
    %223 = vmatpush1.msra.mxu0 0.0
    %224 = vmatprep.subr.mxu0 0.0
    %225 = vmatpush1.msra.mxu0 0.0
    %226 = vmatprep.subr.mxu0 0.0
    %227 = vmatpush1.msra.mxu0 0.0
    %228 = vmatprep.subr.mxu0 0.0
    %229 = vmatpush1.msra.mxu0 0.0
    %230 = vmatprep.subr.mxu0 0.0
    %231 = vmatpush1.msra.mxu0 0.0
    %232 = vmatprep.subr.mxu0 0.0
    %233 = vmatpush1.msra.mxu0 0.0
    %234 = vmatprep.subr.mxu0 0.0
    %235 = vmatpush1.msra.mxu0 %v201
    %236 = vmatprep.subr.mxu0 0.0
    %237 = vmatpush1.msra.mxu0 %v200
    %238 = vmatprep.subr.mxu0 0.0
    %239 = vmatpush1.msra.mxu0 %v199
    %240 = vmatprep.subr.mxu0 0.0
    %241 = vmatpush1.msra.mxu0 %v198
    %242 = vmatprep.subr.mxu0 0.0
    %243 = vmatpush2.msra.mxu0 0.0
    %244 = vmatprep.subr.mxu0 0.0
    %245 = vmatpush2.msra.mxu0 0.0
    %246 = vmatprep.subr.mxu0 0.0
    %247 = vmatpush2.msra.mxu0 0.0
    %248 = vmatprep.subr.mxu0 0.0
    %249 = vmatpush2.msra.mxu0 0.0
    %250 = vmatprep.subr.mxu0 0.0
    %251 = vmatpush2.msra.mxu0 0.0
    %252 = vmatprep.subr.mxu0 0.0
    %253 = vmatpush2.msra.mxu0 0.0
    %254 = vmatprep.subr.mxu0 0.0
    %255 = vmatpush2.msra.mxu0 0.0
    %256 = vmatprep.subr.mxu0 0.0
    %257 = vmatpush2.msra.mxu0 0.0
    %258 = vmatprep.subr.mxu0 0.0
    %259 = vmatpush2.msra.mxu0 0.0
    %260 = vmatprep.subr.mxu0 0.0
    %261 = vmatpush2.msra.mxu0 0.0
    %262 = vmatprep.subr.mxu0 0.0
    %263 = vmatpush2.msra.mxu0 0.0
    %264 = vmatprep.subr.mxu0 0.0
    %265 = vmatpush2.msra.mxu0 0.0
    %266 = vmatprep.subr.mxu0 0.0
    %267 = vmatpush2.msra.mxu0 0.0
    %268 = vmatprep.subr.mxu0 0.0
    %269 = vmatpush2.msra.mxu0 0.0
    %270 = vmatprep.subr.mxu0 0.0
    %271 = vmatpush2.msra.mxu0 0.0
    %272 = vmatprep.subr.mxu0 0.0
    %273 = vmatpush2.msra.mxu0 0.0
    %274 = vmatprep.mubr.f32.mxu0 0.0
    %275 = vmatmul.mubr.f32.gmra.mxu0 %v125
    %v276 = vpop.f32.mrf.mxu0
    %v277 = vadd.f32 %v208, %v276
    %v278 = vpop.f32.mrf.mxu0
    %279 = vdwg.mxu0
    %s280 = scalar_lea.vmem [#allocation7], 64
    %v281 = vld [vmem:[%s280] sm:$0xff]
    %v282 = vld [vmem:[%s280 + $0x8] sm:$0xff]
    %v283 = vld [vmem:[%s280 + $0x10] sm:$0xff]
    %v284 = vld [vmem:[%s280 + $0x18] sm:$0xff]
    %s285 = scalar_lea.vmem %s5, 2
    %v286 = vld [vmem:[%s285] sm:$0x1]
    %v288 = vlaneseq
    %v289 = vshrl.u32 %v288, 7
    %v290 = vsub.s32 0, %v289
    %v291 = vrot.slane %v286, %v290
    %293 = vmatprep.subr.mxu0 0.0
    %294 = vmatpush1.msra.mxu0 0.0
    %295 = vmatprep.subr.mxu0 0.0
    %296 = vmatpush1.msra.mxu0 0.0
    %297 = vmatprep.subr.mxu0 0.0
    %298 = vmatpush1.msra.mxu0 0.0
    %299 = vmatprep.subr.mxu0 0.0
    %300 = vmatpush1.msra.mxu0 0.0
    %301 = vmatprep.subr.mxu0 0.0
    %302 = vmatpush1.msra.mxu0 0.0
    %303 = vmatprep.subr.mxu0 0.0
    %304 = vmatpush1.msra.mxu0 0.0
    %305 = vmatprep.subr.mxu0 0.0
    %306 = vmatpush1.msra.mxu0 0.0
    %307 = vmatprep.subr.mxu0 0.0
    %308 = vmatpush1.msra.mxu0 0.0
    %309 = vmatprep.subr.mxu0 0.0
    %310 = vmatpush1.msra.mxu0 0.0
    %311 = vmatprep.subr.mxu0 0.0
    %312 = vmatpush1.msra.mxu0 0.0
    %313 = vmatprep.subr.mxu0 0.0
    %314 = vmatpush1.msra.mxu0 0.0
    %315 = vmatprep.subr.mxu0 0.0
    %316 = vmatpush1.msra.mxu0 0.0
    %317 = vmatprep.subr.mxu0 0.0
    %318 = vmatpush1.msra.mxu0 %v284
    %319 = vmatprep.subr.mxu0 0.0
    %320 = vmatpush1.msra.mxu0 %v283
    %321 = vmatprep.subr.mxu0 0.0
    %322 = vmatpush1.msra.mxu0 %v282
    %323 = vmatprep.subr.mxu0 0.0
    %324 = vmatpush1.msra.mxu0 %v281
    %325 = vmatprep.subr.mxu0 0.0
    %326 = vmatpush2.msra.mxu0 0.0
    %327 = vmatprep.subr.mxu0 0.0
    %328 = vmatpush2.msra.mxu0 0.0
    %329 = vmatprep.subr.mxu0 0.0
    %330 = vmatpush2.msra.mxu0 0.0
    %331 = vmatprep.subr.mxu0 0.0
    %332 = vmatpush2.msra.mxu0 0.0
    %333 = vmatprep.subr.mxu0 0.0
    %334 = vmatpush2.msra.mxu0 0.0
    %335 = vmatprep.subr.mxu0 0.0
    %336 = vmatpush2.msra.mxu0 0.0
    %337 = vmatprep.subr.mxu0 0.0
    %338 = vmatpush2.msra.mxu0 0.0
    %339 = vmatprep.subr.mxu0 0.0
    %340 = vmatpush2.msra.mxu0 0.0
    %341 = vmatprep.subr.mxu0 0.0
    %342 = vmatpush2.msra.mxu0 0.0
    %343 = vmatprep.subr.mxu0 0.0
    %344 = vmatpush2.msra.mxu0 0.0
    %345 = vmatprep.subr.mxu0 0.0
    %346 = vmatpush2.msra.mxu0 0.0
    %347 = vmatprep.subr.mxu0 0.0
    %348 = vmatpush2.msra.mxu0 0.0
    %349 = vmatprep.subr.mxu0 0.0
    %350 = vmatpush2.msra.mxu0 0.0
    %351 = vmatprep.subr.mxu0 0.0
    %352 = vmatpush2.msra.mxu0 0.0
    %353 = vmatprep.subr.mxu0 0.0
    %354 = vmatpush2.msra.mxu0 0.0
    %355 = vmatprep.subr.mxu0 0.0
    %356 = vmatpush2.msra.mxu0 0.0
    %357 = vmatprep.mubr.f32.mxu0 0.0
    %358 = vmatmul.mubr.f32.gmra.mxu0 %v125
    %v359 = vpop.f32.mrf.mxu0
    %v360 = vadd.f32 %v291, %v359
    %v361 = vpop.f32.mrf.mxu0
    %362 = vdwg.mxu0
    %v363 = vld [vmem:[#allocation8] sm:$0xff]
    %v364 = vld [vmem:[#allocation8 + $0x8] sm:$0xff]
    %v365 = vld [vmem:[#allocation8 + $0x10] sm:$0xff]
    %v366 = vld [vmem:[#allocation8 + $0x18] sm:$0xff]
    %v367 = vld [vmem:[%s6] sm:$0x1]
    %v369 = vlaneseq
    %v370 = vshrl.u32 %v369, 7
    %v371 = vsub.s32 0, %v370
    %v372 = vrot.slane %v367, %v371
    %v375 = vsel %vm123, %v111, 0
    %377 = vmatprep.subr.mxu0 0.0
    %378 = vmatpush1.msra.mxu0 0.0
    %379 = vmatprep.subr.mxu0 0.0
    %380 = vmatpush1.msra.mxu0 0.0
    %381 = vmatprep.subr.mxu0 0.0
    %382 = vmatpush1.msra.mxu0 0.0
    %383 = vmatprep.subr.mxu0 0.0
    %384 = vmatpush1.msra.mxu0 0.0
    %385 = vmatprep.subr.mxu0 0.0
    %386 = vmatpush1.msra.mxu0 0.0
    %387 = vmatprep.subr.mxu0 0.0
    %388 = vmatpush1.msra.mxu0 0.0
    %389 = vmatprep.subr.mxu0 0.0
    %390 = vmatpush1.msra.mxu0 0.0
    %391 = vmatprep.subr.mxu0 0.0
    %392 = vmatpush1.msra.mxu0 0.0
    %393 = vmatprep.subr.mxu0 0.0
    %394 = vmatpush1.msra.mxu0 0.0
    %395 = vmatprep.subr.mxu0 0.0
    %396 = vmatpush1.msra.mxu0 0.0
    %397 = vmatprep.subr.mxu0 0.0
    %398 = vmatpush1.msra.mxu0 0.0
    %399 = vmatprep.subr.mxu0 0.0
    %400 = vmatpush1.msra.mxu0 0.0
    %401 = vmatprep.subr.mxu0 0.0
    %402 = vmatpush1.msra.mxu0 %v366
    %403 = vmatprep.subr.mxu0 0.0
    %404 = vmatpush1.msra.mxu0 %v365
    %405 = vmatprep.subr.mxu0 0.0
    %406 = vmatpush1.msra.mxu0 %v364
    %407 = vmatprep.subr.mxu0 0.0
    %408 = vmatpush1.msra.mxu0 %v363
    %409 = vmatprep.subr.mxu0 0.0
    %410 = vmatpush2.msra.mxu0 0.0
    %411 = vmatprep.subr.mxu0 0.0
    %412 = vmatpush2.msra.mxu0 0.0
    %413 = vmatprep.subr.mxu0 0.0
    %414 = vmatpush2.msra.mxu0 0.0
    %415 = vmatprep.subr.mxu0 0.0
    %416 = vmatpush2.msra.mxu0 0.0
    %417 = vmatprep.subr.mxu0 0.0
    %418 = vmatpush2.msra.mxu0 0.0
    %419 = vmatprep.subr.mxu0 0.0
    %420 = vmatpush2.msra.mxu0 0.0
    %421 = vmatprep.subr.mxu0 0.0
    %422 = vmatpush2.msra.mxu0 0.0
    %423 = vmatprep.subr.mxu0 0.0
    %424 = vmatpush2.msra.mxu0 0.0
    %425 = vmatprep.subr.mxu0 0.0
    %426 = vmatpush2.msra.mxu0 0.0
    %427 = vmatprep.subr.mxu0 0.0
    %428 = vmatpush2.msra.mxu0 0.0
    %429 = vmatprep.subr.mxu0 0.0
    %430 = vmatpush2.msra.mxu0 0.0
    %431 = vmatprep.subr.mxu0 0.0
    %432 = vmatpush2.msra.mxu0 0.0
    %433 = vmatprep.subr.mxu0 0.0
    %434 = vmatpush2.msra.mxu0 0.0
    %435 = vmatprep.subr.mxu0 0.0
    %436 = vmatpush2.msra.mxu0 0.0
    %437 = vmatprep.subr.mxu0 0.0
    %438 = vmatpush2.msra.mxu0 0.0
    %439 = vmatprep.subr.mxu0 0.0
    %440 = vmatpush2.msra.mxu0 0.0
    %441 = vmatprep.mubr.f32.mxu0 0.0
    %442 = vmatmul.mubr.f32.gmra.mxu0 %v375
    %v443 = vpop.f32.mrf.mxu0
    %v444 = vadd.f32 %v372, %v443
    %v445 = vpop.f32.mrf.mxu0
    %446 = vdwg.mxu0
    %s447 = scalar_lea.vmem [#allocation8], 32
    %v448 = vld [vmem:[%s447] sm:$0xff]
    %v449 = vld [vmem:[%s447 + $0x8] sm:$0xff]
    %v450 = vld [vmem:[%s447 + $0x10] sm:$0xff]
    %v451 = vld [vmem:[%s447 + $0x18] sm:$0xff]
    %s452 = scalar_lea.vmem %s6, 1
    %v453 = vld [vmem:[%s452] sm:$0x1]
    %v455 = vlaneseq
    %v456 = vshrl.u32 %v455, 7
    %v457 = vsub.s32 0, %v456
    %v458 = vrot.slane %v453, %v457
    %460 = vmatprep.subr.mxu0 0.0
    %461 = vmatpush1.msra.mxu0 0.0
    %462 = vmatprep.subr.mxu0 0.0
    %463 = vmatpush1.msra.mxu0 0.0
    %464 = vmatprep.subr.mxu0 0.0
    %465 = vmatpush1.msra.mxu0 0.0
    %466 = vmatprep.subr.mxu0 0.0
    %467 = vmatpush1.msra.mxu0 0.0
    %468 = vmatprep.subr.mxu0 0.0
    %469 = vmatpush1.msra.mxu0 0.0
    %470 = vmatprep.subr.mxu0 0.0
    %471 = vmatpush1.msra.mxu0 0.0
    %472 = vmatprep.subr.mxu0 0.0
    %473 = vmatpush1.msra.mxu0 0.0
    %474 = vmatprep.subr.mxu0 0.0
    %475 = vmatpush1.msra.mxu0 0.0
    %476 = vmatprep.subr.mxu0 0.0
    %477 = vmatpush1.msra.mxu0 0.0
    %478 = vmatprep.subr.mxu0 0.0
    %479 = vmatpush1.msra.mxu0 0.0
    %480 = vmatprep.subr.mxu0 0.0
    %481 = vmatpush1.msra.mxu0 0.0
    %482 = vmatprep.subr.mxu0 0.0
    %483 = vmatpush1.msra.mxu0 0.0
    %484 = vmatprep.subr.mxu0 0.0
    %485 = vmatpush1.msra.mxu0 %v451
    %486 = vmatprep.subr.mxu0 0.0
    %487 = vmatpush1.msra.mxu0 %v450
    %488 = vmatprep.subr.mxu0 0.0
    %489 = vmatpush1.msra.mxu0 %v449
    %490 = vmatprep.subr.mxu0 0.0
    %491 = vmatpush1.msra.mxu0 %v448
    %492 = vmatprep.subr.mxu0 0.0
    %493 = vmatpush2.msra.mxu0 0.0
    %494 = vmatprep.subr.mxu0 0.0
    %495 = vmatpush2.msra.mxu0 0.0
    %496 = vmatprep.subr.mxu0 0.0
    %497 = vmatpush2.msra.mxu0 0.0
    %498 = vmatprep.subr.mxu0 0.0
    %499 = vmatpush2.msra.mxu0 0.0
    %500 = vmatprep.subr.mxu0 0.0
    %501 = vmatpush2.msra.mxu0 0.0
    %502 = vmatprep.subr.mxu0 0.0
    %503 = vmatpush2.msra.mxu0 0.0
    %504 = vmatprep.subr.mxu0 0.0
    %505 = vmatpush2.msra.mxu0 0.0
    %506 = vmatprep.subr.mxu0 0.0
    %507 = vmatpush2.msra.mxu0 0.0
    %508 = vmatprep.subr.mxu0 0.0
    %509 = vmatpush2.msra.mxu0 0.0
    %510 = vmatprep.subr.mxu0 0.0
    %511 = vmatpush2.msra.mxu0 0.0
    %512 = vmatprep.subr.mxu0 0.0
    %513 = vmatpush2.msra.mxu0 0.0
    %514 = vmatprep.subr.mxu0 0.0
    %515 = vmatpush2.msra.mxu0 0.0
    %516 = vmatprep.subr.mxu0 0.0
    %517 = vmatpush2.msra.mxu0 0.0
    %518 = vmatprep.subr.mxu0 0.0
    %519 = vmatpush2.msra.mxu0 0.0
    %520 = vmatprep.subr.mxu0 0.0
    %521 = vmatpush2.msra.mxu0 0.0
    %522 = vmatprep.subr.mxu0 0.0
    %523 = vmatpush2.msra.mxu0 0.0
    %524 = vmatprep.mubr.f32.mxu0 0.0
    %525 = vmatmul.mubr.f32.gmra.mxu0 %v375
    %v526 = vpop.f32.mrf.mxu0
    %v527 = vadd.f32 %v458, %v526
    %v528 = vpop.f32.mrf.mxu0
    %529 = vdwg.mxu0
    %s530 = scalar_lea.vmem [#allocation8], 64
    %v531 = vld [vmem:[%s530] sm:$0xff]
    %v532 = vld [vmem:[%s530 + $0x8] sm:$0xff]
    %v533 = vld [vmem:[%s530 + $0x10] sm:$0xff]
    %v534 = vld [vmem:[%s530 + $0x18] sm:$0xff]
    %s535 = scalar_lea.vmem %s6, 2
    %v536 = vld [vmem:[%s535] sm:$0x1]
    %v538 = vlaneseq
    %v539 = vshrl.u32 %v538, 7
    %v540 = vsub.s32 0, %v539
    %v541 = vrot.slane %v536, %v540
    %543 = vmatprep.subr.mxu0 0.0
    %544 = vmatpush1.msra.mxu0 0.0
    %545 = vmatprep.subr.mxu0 0.0
    %546 = vmatpush1.msra.mxu0 0.0
    %547 = vmatprep.subr.mxu0 0.0
    %548 = vmatpush1.msra.mxu0 0.0
    %549 = vmatprep.subr.mxu0 0.0
    %550 = vmatpush1.msra.mxu0 0.0
    %551 = vmatprep.subr.mxu0 0.0
    %552 = vmatpush1.msra.mxu0 0.0
    %553 = vmatprep.subr.mxu0 0.0
    %554 = vmatpush1.msra.mxu0 0.0
    %555 = vmatprep.subr.mxu0 0.0
    %556 = vmatpush1.msra.mxu0 0.0
    %557 = vmatprep.subr.mxu0 0.0
    %558 = vmatpush1.msra.mxu0 0.0
    %559 = vmatprep.subr.mxu0 0.0
    %560 = vmatpush1.msra.mxu0 0.0
    %561 = vmatprep.subr.mxu0 0.0
    %562 = vmatpush1.msra.mxu0 0.0
    %563 = vmatprep.subr.mxu0 0.0
    %564 = vmatpush1.msra.mxu0 0.0
    %565 = vmatprep.subr.mxu0 0.0
    %566 = vmatpush1.msra.mxu0 0.0
    %567 = vmatprep.subr.mxu0 0.0
    %568 = vmatpush1.msra.mxu0 %v534
    %569 = vmatprep.subr.mxu0 0.0
    %570 = vmatpush1.msra.mxu0 %v533
    %571 = vmatprep.subr.mxu0 0.0
    %572 = vmatpush1.msra.mxu0 %v532
    %573 = vmatprep.subr.mxu0 0.0
    %574 = vmatpush1.msra.mxu0 %v531
    %575 = vmatprep.subr.mxu0 0.0
    %576 = vmatpush2.msra.mxu0 0.0
    %577 = vmatprep.subr.mxu0 0.0
    %578 = vmatpush2.msra.mxu0 0.0
    %579 = vmatprep.subr.mxu0 0.0
    %580 = vmatpush2.msra.mxu0 0.0
    %581 = vmatprep.subr.mxu0 0.0
    %582 = vmatpush2.msra.mxu0 0.0
    %583 = vmatprep.subr.mxu0 0.0
    %584 = vmatpush2.msra.mxu0 0.0
    %585 = vmatprep.subr.mxu0 0.0
    %586 = vmatpush2.msra.mxu0 0.0
    %587 = vmatprep.subr.mxu0 0.0
    %588 = vmatpush2.msra.mxu0 0.0
    %589 = vmatprep.subr.mxu0 0.0
    %590 = vmatpush2.msra.mxu0 0.0
    %591 = vmatprep.subr.mxu0 0.0
    %592 = vmatpush2.msra.mxu0 0.0
    %593 = vmatprep.subr.mxu0 0.0
    %594 = vmatpush2.msra.mxu0 0.0
    %595 = vmatprep.subr.mxu0 0.0
    %596 = vmatpush2.msra.mxu0 0.0
    %597 = vmatprep.subr.mxu0 0.0
    %598 = vmatpush2.msra.mxu0 0.0
    %599 = vmatprep.subr.mxu0 0.0
    %600 = vmatpush2.msra.mxu0 0.0
    %601 = vmatprep.subr.mxu0 0.0
    %602 = vmatpush2.msra.mxu0 0.0
    %603 = vmatprep.subr.mxu0 0.0
    %604 = vmatpush2.msra.mxu0 0.0
    %605 = vmatprep.subr.mxu0 0.0
    %606 = vmatpush2.msra.mxu0 0.0
    %607 = vmatprep.mubr.f32.mxu0 0.0
    %608 = vmatmul.mubr.f32.gmra.mxu0 %v375
    %v609 = vpop.f32.mrf.mxu0
    %v610 = vadd.f32 %v541, %v609
    %v611 = vpop.f32.mrf.mxu0
    %612 = vdwg.mxu0
    %v613 = vadd.f32 %v194, %v444
    %v614 = vxor.u32 %v613, 2147483648
    %v615 = vmul.f32 %v614, 1.442695
    %v616 = vpow.pop %v615
    %v617 = vadd.f32 %v616, 1.0
    %v618 = vrcp.pop %v617
    %v619 = vmul.f32 1.0, %v618
    %v620 = vadd.f32 %v277, %v527
    %v621 = vxor.u32 %v620, 2147483648
    %v622 = vmul.f32 %v621, 1.442695
    %v623 = vpow.pop %v622
    %v624 = vadd.f32 %v623, 1.0
    %v625 = vrcp.pop %v624
    %v626 = vmul.f32 1.0, %v625
    %v627 = vmul.f32 %v619, %v610
    %v628 = vadd.f32 %v360, %v627
    %v629 = vtanh.pop %v628
    %v630 = vsub.f32 1.0, %v626
    %v631 = vmul.f32 %v630, %v629
    %v632 = vmul.f32 %v626, %v111
    %v633 = vadd.f32 %v631, %v632
    %634 = vst.msk [vmem:[#allocation11] sm:$0xff] %vm123, %v633
    %s635 = scalar_lea.vmem %s2, 8
    %v636 = vld [vmem:[%s635] sm:$0xff]
    %s637 = scalar_lea.vmem [#allocation7], 96
    %v638 = vld [vmem:[%s637] sm:$0xff]
    %v639 = vld [vmem:[%s637 + $0x8] sm:$0xff]
    %v640 = vld [vmem:[%s637 + $0x10] sm:$0xff]
    %v641 = vld [vmem:[%s637 + $0x18] sm:$0xff]
    %s642 = scalar_lea.vmem %s5, 3
    %v643 = vld [vmem:[%s642] sm:$0x1]
    %v645 = vlaneseq
    %v646 = vshrl.u32 %v645, 7
    %v647 = vsub.s32 0, %v646
    %v648 = vrot.slane %v643, %v647
    %v651 = vsel %vm123, %v633, 0
    %653 = vmatprep.subr.mxu0 0.0
    %654 = vmatpush1.msra.mxu0 0.0
    %655 = vmatprep.subr.mxu0 0.0
    %656 = vmatpush1.msra.mxu0 0.0
    %657 = vmatprep.subr.mxu0 0.0
    %658 = vmatpush1.msra.mxu0 0.0
    %659 = vmatprep.subr.mxu0 0.0
    %660 = vmatpush1.msra.mxu0 0.0
    %661 = vmatprep.subr.mxu0 0.0
    %662 = vmatpush1.msra.mxu0 0.0
    %663 = vmatprep.subr.mxu0 0.0
    %664 = vmatpush1.msra.mxu0 0.0
    %665 = vmatprep.subr.mxu0 0.0
    %666 = vmatpush1.msra.mxu0 0.0
    %667 = vmatprep.subr.mxu0 0.0
    %668 = vmatpush1.msra.mxu0 0.0
    %669 = vmatprep.subr.mxu0 0.0
    %670 = vmatpush1.msra.mxu0 0.0
    %671 = vmatprep.subr.mxu0 0.0
    %672 = vmatpush1.msra.mxu0 0.0
    %673 = vmatprep.subr.mxu0 0.0
    %674 = vmatpush1.msra.mxu0 0.0
    %675 = vmatprep.subr.mxu0 0.0
    %676 = vmatpush1.msra.mxu0 0.0
    %677 = vmatprep.subr.mxu0 0.0
    %678 = vmatpush1.msra.mxu0 %v641
    %679 = vmatprep.subr.mxu0 0.0
    %680 = vmatpush1.msra.mxu0 %v640
    %681 = vmatprep.subr.mxu0 0.0
    %682 = vmatpush1.msra.mxu0 %v639
    %683 = vmatprep.subr.mxu0 0.0
    %684 = vmatpush1.msra.mxu0 %v638
    %685 = vmatprep.subr.mxu0 0.0
    %686 = vmatpush2.msra.mxu0 0.0
    %687 = vmatprep.subr.mxu0 0.0
    %688 = vmatpush2.msra.mxu0 0.0
    %689 = vmatprep.subr.mxu0 0.0
    %690 = vmatpush2.msra.mxu0 0.0
    %691 = vmatprep.subr.mxu0 0.0
    %692 = vmatpush2.msra.mxu0 0.0
    %693 = vmatprep.subr.mxu0 0.0
    %694 = vmatpush2.msra.mxu0 0.0
    %695 = vmatprep.subr.mxu0 0.0
    %696 = vmatpush2.msra.mxu0 0.0
    %697 = vmatprep.subr.mxu0 0.0
    %698 = vmatpush2.msra.mxu0 0.0
    %699 = vmatprep.subr.mxu0 0.0
    %700 = vmatpush2.msra.mxu0 0.0
    %701 = vmatprep.subr.mxu0 0.0
    %702 = vmatpush2.msra.mxu0 0.0
    %703 = vmatprep.subr.mxu0 0.0
    %704 = vmatpush2.msra.mxu0 0.0
    %705 = vmatprep.subr.mxu0 0.0
    %706 = vmatpush2.msra.mxu0 0.0
    %707 = vmatprep.subr.mxu0 0.0
    %708 = vmatpush2.msra.mxu0 0.0
    %709 = vmatprep.subr.mxu0 0.0
    %710 = vmatpush2.msra.mxu0 0.0
    %711 = vmatprep.subr.mxu0 0.0
    %712 = vmatpush2.msra.mxu0 0.0
    %713 = vmatprep.subr.mxu0 0.0
    %714 = vmatpush2.msra.mxu0 0.0
    %715 = vmatprep.subr.mxu0 0.0
    %716 = vmatpush2.msra.mxu0 0.0
    %717 = vmatprep.mubr.f32.mxu0 0.0
    %718 = vmatmul.mubr.f32.gmra.mxu0 %v651
    %v719 = vpop.f32.mrf.mxu0
    %v720 = vadd.f32 %v648, %v719
    %v721 = vpop.f32.mrf.mxu0
    %722 = vdwg.mxu0
    %s723 = scalar_lea.vmem [#allocation7], 128
    %v724 = vld [vmem:[%s723] sm:$0xff]
    %v725 = vld [vmem:[%s723 + $0x8] sm:$0xff]
    %v726 = vld [vmem:[%s723 + $0x10] sm:$0xff]
    %v727 = vld [vmem:[%s723 + $0x18] sm:$0xff]
    %s728 = scalar_lea.vmem %s5, 4
    %v729 = vld [vmem:[%s728] sm:$0x1]
    %v731 = vlaneseq
    %v732 = vshrl.u32 %v731, 7
    %v733 = vsub.s32 0, %v732
    %v734 = vrot.slane %v729, %v733
    %736 = vmatprep.subr.mxu0 0.0
    %737 = vmatpush1.msra.mxu0 0.0
    %738 = vmatprep.subr.mxu0 0.0
    %739 = vmatpush1.msra.mxu0 0.0
    %740 = vmatprep.subr.mxu0 0.0
    %741 = vmatpush1.msra.mxu0 0.0
    %742 = vmatprep.subr.mxu0 0.0
    %743 = vmatpush1.msra.mxu0 0.0
    %744 = vmatprep.subr.mxu0 0.0
    %745 = vmatpush1.msra.mxu0 0.0
    %746 = vmatprep.subr.mxu0 0.0
    %747 = vmatpush1.msra.mxu0 0.0
    %748 = vmatprep.subr.mxu0 0.0
    %749 = vmatpush1.msra.mxu0 0.0
    %750 = vmatprep.subr.mxu0 0.0
    %751 = vmatpush1.msra.mxu0 0.0
    %752 = vmatprep.subr.mxu0 0.0
    %753 = vmatpush1.msra.mxu0 0.0
    %754 = vmatprep.subr.mxu0 0.0
    %755 = vmatpush1.msra.mxu0 0.0
    %756 = vmatprep.subr.mxu0 0.0
    %757 = vmatpush1.msra.mxu0 0.0
    %758 = vmatprep.subr.mxu0 0.0
    %759 = vmatpush1.msra.mxu0 0.0
    %760 = vmatprep.subr.mxu0 0.0
    %761 = vmatpush1.msra.mxu0 %v727
    %762 = vmatprep.subr.mxu0 0.0
    %763 = vmatpush1.msra.mxu0 %v726
    %764 = vmatprep.subr.mxu0 0.0
    %765 = vmatpush1.msra.mxu0 %v725
    %766 = vmatprep.subr.mxu0 0.0
    %767 = vmatpush1.msra.mxu0 %v724
    %768 = vmatprep.subr.mxu0 0.0
    %769 = vmatpush2.msra.mxu0 0.0
    %770 = vmatprep.subr.mxu0 0.0
    %771 = vmatpush2.msra.mxu0 0.0
    %772 = vmatprep.subr.mxu0 0.0
    %773 = vmatpush2.msra.mxu0 0.0
    %774 = vmatprep.subr.mxu0 0.0
    %775 = vmatpush2.msra.mxu0 0.0
    %776 = vmatprep.subr.mxu0 0.0
    %777 = vmatpush2.msra.mxu0 0.0
    %778 = vmatprep.subr.mxu0 0.0
    %779 = vmatpush2.msra.mxu0 0.0
    %780 = vmatprep.subr.mxu0 0.0
    %781 = vmatpush2.msra.mxu0 0.0
    %782 = vmatprep.subr.mxu0 0.0
    %783 = vmatpush2.msra.mxu0 0.0
    %784 = vmatprep.subr.mxu0 0.0
    %785 = vmatpush2.msra.mxu0 0.0
    %786 = vmatprep.subr.mxu0 0.0
    %787 = vmatpush2.msra.mxu0 0.0
    %788 = vmatprep.subr.mxu0 0.0
    %789 = vmatpush2.msra.mxu0 0.0
    %790 = vmatprep.subr.mxu0 0.0
    %791 = vmatpush2.msra.mxu0 0.0
    %792 = vmatprep.subr.mxu0 0.0
    %793 = vmatpush2.msra.mxu0 0.0
    %794 = vmatprep.subr.mxu0 0.0
    %795 = vmatpush2.msra.mxu0 0.0
    %796 = vmatprep.subr.mxu0 0.0
    %797 = vmatpush2.msra.mxu0 0.0
    %798 = vmatprep.subr.mxu0 0.0
    %799 = vmatpush2.msra.mxu0 0.0
    %800 = vmatprep.mubr.f32.mxu0 0.0
    %801 = vmatmul.mubr.f32.gmra.mxu0 %v651
    %v802 = vpop.f32.mrf.mxu0
    %v803 = vadd.f32 %v734, %v802
    %v804 = vpop.f32.mrf.mxu0
    %805 = vdwg.mxu0
    %s806 = scalar_lea.vmem [#allocation7], 160
    %v807 = vld [vmem:[%s806] sm:$0xff]
    %v808 = vld [vmem:[%s806 + $0x8] sm:$0xff]
    %v809 = vld [vmem:[%s806 + $0x10] sm:$0xff]
    %v810 = vld [vmem:[%s806 + $0x18] sm:$0xff]
    %s811 = scalar_lea.vmem %s5, 5
    %v812 = vld [vmem:[%s811] sm:$0x1]
    %v814 = vlaneseq
    %v815 = vshrl.u32 %v814, 7
    %v816 = vsub.s32 0, %v815
    %v817 = vrot.slane %v812, %v816
    %819 = vmatprep.subr.mxu0 0.0
    %820 = vmatpush1.msra.mxu0 0.0
    %821 = vmatprep.subr.mxu0 0.0
    %822 = vmatpush1.msra.mxu0 0.0
    %823 = vmatprep.subr.mxu0 0.0
    %824 = vmatpush1.msra.mxu0 0.0
    %825 = vmatprep.subr.mxu0 0.0
    %826 = vmatpush1.msra.mxu0 0.0
    %827 = vmatprep.subr.mxu0 0.0
    %828 = vmatpush1.msra.mxu0 0.0
    %829 = vmatprep.subr.mxu0 0.0
    %830 = vmatpush1.msra.mxu0 0.0
    %831 = vmatprep.subr.mxu0 0.0
    %832 = vmatpush1.msra.mxu0 0.0
    %833 = vmatprep.subr.mxu0 0.0
    %834 = vmatpush1.msra.mxu0 0.0
    %835 = vmatprep.subr.mxu0 0.0
    %836 = vmatpush1.msra.mxu0 0.0
    %837 = vmatprep.subr.mxu0 0.0
    %838 = vmatpush1.msra.mxu0 0.0
    %839 = vmatprep.subr.mxu0 0.0
    %840 = vmatpush1.msra.mxu0 0.0
    %841 = vmatprep.subr.mxu0 0.0
    %842 = vmatpush1.msra.mxu0 0.0
    %843 = vmatprep.subr.mxu0 0.0
    %844 = vmatpush1.msra.mxu0 %v810
    %845 = vmatprep.subr.mxu0 0.0
    %846 = vmatpush1.msra.mxu0 %v809
    %847 = vmatprep.subr.mxu0 0.0
    %848 = vmatpush1.msra.mxu0 %v808
    %849 = vmatprep.subr.mxu0 0.0
    %850 = vmatpush1.msra.mxu0 %v807
    %851 = vmatprep.subr.mxu0 0.0
    %852 = vmatpush2.msra.mxu0 0.0
    %853 = vmatprep.subr.mxu0 0.0
    %854 = vmatpush2.msra.mxu0 0.0
    %855 = vmatprep.subr.mxu0 0.0
    %856 = vmatpush2.msra.mxu0 0.0
    %857 = vmatprep.subr.mxu0 0.0
    %858 = vmatpush2.msra.mxu0 0.0
    %859 = vmatprep.subr.mxu0 0.0
    %860 = vmatpush2.msra.mxu0 0.0
    %861 = vmatprep.subr.mxu0 0.0
    %862 = vmatpush2.msra.mxu0 0.0
    %863 = vmatprep.subr.mxu0 0.0
    %864 = vmatpush2.msra.mxu0 0.0
    %865 = vmatprep.subr.mxu0 0.0
    %866 = vmatpush2.msra.mxu0 0.0
    %867 = vmatprep.subr.mxu0 0.0
    %868 = vmatpush2.msra.mxu0 0.0
    %869 = vmatprep.subr.mxu0 0.0
    %870 = vmatpush2.msra.mxu0 0.0
    %871 = vmatprep.subr.mxu0 0.0
    %872 = vmatpush2.msra.mxu0 0.0
    %873 = vmatprep.subr.mxu0 0.0
    %874 = vmatpush2.msra.mxu0 0.0
    %875 = vmatprep.subr.mxu0 0.0
    %876 = vmatpush2.msra.mxu0 0.0
    %877 = vmatprep.subr.mxu0 0.0
    %878 = vmatpush2.msra.mxu0 0.0
    %879 = vmatprep.subr.mxu0 0.0
    %880 = vmatpush2.msra.mxu0 0.0
    %881 = vmatprep.subr.mxu0 0.0
    %882 = vmatpush2.msra.mxu0 0.0
    %883 = vmatprep.mubr.f32.mxu0 0.0
    %884 = vmatmul.mubr.f32.gmra.mxu0 %v651
    %v885 = vpop.f32.mrf.mxu0
    %v886 = vadd.f32 %v817, %v885
    %v887 = vpop.f32.mrf.mxu0
    %888 = vdwg.mxu0
    %s889 = scalar_lea.vmem [#allocation8], 96
    %v890 = vld [vmem:[%s889] sm:$0xff]
    %v891 = vld [vmem:[%s889 + $0x8] sm:$0xff]
    %v892 = vld [vmem:[%s889 + $0x10] sm:$0xff]
    %v893 = vld [vmem:[%s889 + $0x18] sm:$0xff]
    %s894 = scalar_lea.vmem %s6, 3
    %v895 = vld [vmem:[%s894] sm:$0x1]
    %v897 = vlaneseq
    %v898 = vshrl.u32 %v897, 7
    %v899 = vsub.s32 0, %v898
    %v900 = vrot.slane %v895, %v899
    %v903 = vsel %vm123, %v636, 0
    %905 = vmatprep.subr.mxu0 0.0
    %906 = vmatpush1.msra.mxu0 0.0
    %907 = vmatprep.subr.mxu0 0.0
    %908 = vmatpush1.msra.mxu0 0.0
    %909 = vmatprep.subr.mxu0 0.0
    %910 = vmatpush1.msra.mxu0 0.0
    %911 = vmatprep.subr.mxu0 0.0
    %912 = vmatpush1.msra.mxu0 0.0
    %913 = vmatprep.subr.mxu0 0.0
    %914 = vmatpush1.msra.mxu0 0.0
    %915 = vmatprep.subr.mxu0 0.0
    %916 = vmatpush1.msra.mxu0 0.0
    %917 = vmatprep.subr.mxu0 0.0
    %918 = vmatpush1.msra.mxu0 0.0
    %919 = vmatprep.subr.mxu0 0.0
    %920 = vmatpush1.msra.mxu0 0.0
    %921 = vmatprep.subr.mxu0 0.0
    %922 = vmatpush1.msra.mxu0 0.0
    %923 = vmatprep.subr.mxu0 0.0
    %924 = vmatpush1.msra.mxu0 0.0
    %925 = vmatprep.subr.mxu0 0.0
    %926 = vmatpush1.msra.mxu0 0.0
    %927 = vmatprep.subr.mxu0 0.0
    %928 = vmatpush1.msra.mxu0 0.0
    %929 = vmatprep.subr.mxu0 0.0
    %930 = vmatpush1.msra.mxu0 %v893
    %931 = vmatprep.subr.mxu0 0.0
    %932 = vmatpush1.msra.mxu0 %v892
    %933 = vmatprep.subr.mxu0 0.0
    %934 = vmatpush1.msra.mxu0 %v891
    %935 = vmatprep.subr.mxu0 0.0
    %936 = vmatpush1.msra.mxu0 %v890
    %937 = vmatprep.subr.mxu0 0.0
    %938 = vmatpush2.msra.mxu0 0.0
    %939 = vmatprep.subr.mxu0 0.0
    %940 = vmatpush2.msra.mxu0 0.0
    %941 = vmatprep.subr.mxu0 0.0
    %942 = vmatpush2.msra.mxu0 0.0
    %943 = vmatprep.subr.mxu0 0.0
    %944 = vmatpush2.msra.mxu0 0.0
    %945 = vmatprep.subr.mxu0 0.0
    %946 = vmatpush2.msra.mxu0 0.0
    %947 = vmatprep.subr.mxu0 0.0
    %948 = vmatpush2.msra.mxu0 0.0
    %949 = vmatprep.subr.mxu0 0.0
    %950 = vmatpush2.msra.mxu0 0.0
    %951 = vmatprep.subr.mxu0 0.0
    %952 = vmatpush2.msra.mxu0 0.0
    %953 = vmatprep.subr.mxu0 0.0
    %954 = vmatpush2.msra.mxu0 0.0
    %955 = vmatprep.subr.mxu0 0.0
    %956 = vmatpush2.msra.mxu0 0.0
    %957 = vmatprep.subr.mxu0 0.0
    %958 = vmatpush2.msra.mxu0 0.0
    %959 = vmatprep.subr.mxu0 0.0
    %960 = vmatpush2.msra.mxu0 0.0
    %961 = vmatprep.subr.mxu0 0.0
    %962 = vmatpush2.msra.mxu0 0.0
    %963 = vmatprep.subr.mxu0 0.0
    %964 = vmatpush2.msra.mxu0 0.0
    %965 = vmatprep.subr.mxu0 0.0
    %966 = vmatpush2.msra.mxu0 0.0
    %967 = vmatprep.subr.mxu0 0.0
    %968 = vmatpush2.msra.mxu0 0.0
    %969 = vmatprep.mubr.f32.mxu0 0.0
    %970 = vmatmul.mubr.f32.gmra.mxu0 %v903
    %v971 = vpop.f32.mrf.mxu0
    %v972 = vadd.f32 %v900, %v971
    %v973 = vpop.f32.mrf.mxu0
    %974 = vdwg.mxu0
    %s975 = scalar_lea.vmem [#allocation8], 128
    %v976 = vld [vmem:[%s975] sm:$0xff]
    %v977 = vld [vmem:[%s975 + $0x8] sm:$0xff]
    %v978 = vld [vmem:[%s975 + $0x10] sm:$0xff]
    %v979 = vld [vmem:[%s975 + $0x18] sm:$0xff]
    %s980 = scalar_lea.vmem %s6, 4
    %v981 = vld [vmem:[%s980] sm:$0x1]
    %v983 = vlaneseq
    %v984 = vshrl.u32 %v983, 7
    %v985 = vsub.s32 0, %v984
    %v986 = vrot.slane %v981, %v985
    %988 = vmatprep.subr.mxu0 0.0
    %989 = vmatpush1.msra.mxu0 0.0
    %990 = vmatprep.subr.mxu0 0.0
    %991 = vmatpush1.msra.mxu0 0.0
    %992 = vmatprep.subr.mxu0 0.0
    %993 = vmatpush1.msra.mxu0 0.0
    %994 = vmatprep.subr.mxu0 0.0
    %995 = vmatpush1.msra.mxu0 0.0
    %996 = vmatprep.subr.mxu0 0.0
    %997 = vmatpush1.msra.mxu0 0.0
    %998 = vmatprep.subr.mxu0 0.0
    %999 = vmatpush1.msra.mxu0 0.0
    %1000 = vmatprep.subr.mxu0 0.0
    %1001 = vmatpush1.msra.mxu0 0.0
    %1002 = vmatprep.subr.mxu0 0.0
    %1003 = vmatpush1.msra.mxu0 0.0
    %1004 = vmatprep.subr.mxu0 0.0
    %1005 = vmatpush1.msra.mxu0 0.0
    %1006 = vmatprep.subr.mxu0 0.0
    %1007 = vmatpush1.msra.mxu0 0.0
    %1008 = vmatprep.subr.mxu0 0.0
    %1009 = vmatpush1.msra.mxu0 0.0
    %1010 = vmatprep.subr.mxu0 0.0
    %1011 = vmatpush1.msra.mxu0 0.0
    %1012 = vmatprep.subr.mxu0 0.0
    %1013 = vmatpush1.msra.mxu0 %v979
    %1014 = vmatprep.subr.mxu0 0.0
    %1015 = vmatpush1.msra.mxu0 %v978
    %1016 = vmatprep.subr.mxu0 0.0
    %1017 = vmatpush1.msra.mxu0 %v977
    %1018 = vmatprep.subr.mxu0 0.0
    %1019 = vmatpush1.msra.mxu0 %v976
    %1020 = vmatprep.subr.mxu0 0.0
    %1021 = vmatpush2.msra.mxu0 0.0
    %1022 = vmatprep.subr.mxu0 0.0
    %1023 = vmatpush2.msra.mxu0 0.0
    %1024 = vmatprep.subr.mxu0 0.0
    %1025 = vmatpush2.msra.mxu0 0.0
    %1026 = vmatprep.subr.mxu0 0.0
    %1027 = vmatpush2.msra.mxu0 0.0
    %1028 = vmatprep.subr.mxu0 0.0
    %1029 = vmatpush2.msra.mxu0 0.0
    %1030 = vmatprep.subr.mxu0 0.0
    %1031 = vmatpush2.msra.mxu0 0.0
    %1032 = vmatprep.subr.mxu0 0.0
    %1033 = vmatpush2.msra.mxu0 0.0
    %1034 = vmatprep.subr.mxu0 0.0
    %1035 = vmatpush2.msra.mxu0 0.0
    %1036 = vmatprep.subr.mxu0 0.0
    %1037 = vmatpush2.msra.mxu0 0.0
    %1038 = vmatprep.subr.mxu0 0.0
    %1039 = vmatpush2.msra.mxu0 0.0
    %1040 = vmatprep.subr.mxu0 0.0
    %1041 = vmatpush2.msra.mxu0 0.0
    %1042 = vmatprep.subr.mxu0 0.0
    %1043 = vmatpush2.msra.mxu0 0.0
    %1044 = vmatprep.subr.mxu0 0.0
    %1045 = vmatpush2.msra.mxu0 0.0
    %1046 = vmatprep.subr.mxu0 0.0
    %1047 = vmatpush2.msra.mxu0 0.0
    %1048 = vmatprep.subr.mxu0 0.0
    %1049 = vmatpush2.msra.mxu0 0.0
    %1050 = vmatprep.subr.mxu0 0.0
    %1051 = vmatpush2.msra.mxu0 0.0
    %1052 = vmatprep.mubr.f32.mxu0 0.0
    %1053 = vmatmul.mubr.f32.gmra.mxu0 %v903
    %v1054 = vpop.f32.mrf.mxu0
    %v1055 = vadd.f32 %v986, %v1054
    %v1056 = vpop.f32.mrf.mxu0
    %1057 = vdwg.mxu0
    %s1058 = scalar_lea.vmem [#allocation8], 160
    %v1059 = vld [vmem:[%s1058] sm:$0xff]
    %v1060 = vld [vmem:[%s1058 + $0x8] sm:$0xff]
    %v1061 = vld [vmem:[%s1058 + $0x10] sm:$0xff]
    %v1062 = vld [vmem:[%s1058 + $0x18] sm:$0xff]
    %s1063 = scalar_lea.vmem %s6, 5
    %v1064 = vld [vmem:[%s1063] sm:$0x1]
    %v1066 = vlaneseq
    %v1067 = vshrl.u32 %v1066, 7
    %v1068 = vsub.s32 0, %v1067
    %v1069 = vrot.slane %v1064, %v1068
    %1071 = vmatprep.subr.mxu0 0.0
    %1072 = vmatpush1.msra.mxu0 0.0
    %1073 = vmatprep.subr.mxu0 0.0
    %1074 = vmatpush1.msra.mxu0 0.0
    %1075 = vmatprep.subr.mxu0 0.0
    %1076 = vmatpush1.msra.mxu0 0.0
    %1077 = vmatprep.subr.mxu0 0.0
    %1078 = vmatpush1.msra.mxu0 0.0
    %1079 = vmatprep.subr.mxu0 0.0
    %1080 = vmatpush1.msra.mxu0 0.0
    %1081 = vmatprep.subr.mxu0 0.0
    %1082 = vmatpush1.msra.mxu0 0.0
    %1083 = vmatprep.subr.mxu0 0.0
    %1084 = vmatpush1.msra.mxu0 0.0
    %1085 = vmatprep.subr.mxu0 0.0
    %1086 = vmatpush1.msra.mxu0 0.0
    %1087 = vmatprep.subr.mxu0 0.0
    %1088 = vmatpush1.msra.mxu0 0.0
    %1089 = vmatprep.subr.mxu0 0.0
    %1090 = vmatpush1.msra.mxu0 0.0
    %1091 = vmatprep.subr.mxu0 0.0
    %1092 = vmatpush1.msra.mxu0 0.0
    %1093 = vmatprep.subr.mxu0 0.0
    %1094 = vmatpush1.msra.mxu0 0.0
    %1095 = vmatprep.subr.mxu0 0.0
    %1096 = vmatpush1.msra.mxu0 %v1062
    %1097 = vmatprep.subr.mxu0 0.0
    %1098 = vmatpush1.msra.mxu0 %v1061
    %1099 = vmatprep.subr.mxu0 0.0
    %1100 = vmatpush1.msra.mxu0 %v1060
    %1101 = vmatprep.subr.mxu0 0.0
    %1102 = vmatpush1.msra.mxu0 %v1059
    %1103 = vmatprep.subr.mxu0 0.0
    %1104 = vmatpush2.msra.mxu0 0.0
    %1105 = vmatprep.subr.mxu0 0.0
    %1106 = vmatpush2.msra.mxu0 0.0
    %1107 = vmatprep.subr.mxu0 0.0
    %1108 = vmatpush2.msra.mxu0 0.0
    %1109 = vmatprep.subr.mxu0 0.0
    %1110 = vmatpush2.msra.mxu0 0.0
    %1111 = vmatprep.subr.mxu0 0.0
    %1112 = vmatpush2.msra.mxu0 0.0
    %1113 = vmatprep.subr.mxu0 0.0
    %1114 = vmatpush2.msra.mxu0 0.0
    %1115 = vmatprep.subr.mxu0 0.0
    %1116 = vmatpush2.msra.mxu0 0.0
    %1117 = vmatprep.subr.mxu0 0.0
    %1118 = vmatpush2.msra.mxu0 0.0
    %1119 = vmatprep.subr.mxu0 0.0
    %1120 = vmatpush2.msra.mxu0 0.0
    %1121 = vmatprep.subr.mxu0 0.0
    %1122 = vmatpush2.msra.mxu0 0.0
    %1123 = vmatprep.subr.mxu0 0.0
    %1124 = vmatpush2.msra.mxu0 0.0
    %1125 = vmatprep.subr.mxu0 0.0
    %1126 = vmatpush2.msra.mxu0 0.0
    %1127 = vmatprep.subr.mxu0 0.0
    %1128 = vmatpush2.msra.mxu0 0.0
    %1129 = vmatprep.subr.mxu0 0.0
    %1130 = vmatpush2.msra.mxu0 0.0
    %1131 = vmatprep.subr.mxu0 0.0
    %1132 = vmatpush2.msra.mxu0 0.0
    %1133 = vmatprep.subr.mxu0 0.0
    %1134 = vmatpush2.msra.mxu0 0.0
    %1135 = vmatprep.mubr.f32.mxu0 0.0
    %1136 = vmatmul.mubr.f32.gmra.mxu0 %v903
    %v1137 = vpop.f32.mrf.mxu0
    %v1138 = vadd.f32 %v1069, %v1137
    %v1139 = vpop.f32.mrf.mxu0
    %1140 = vdwg.mxu0
    %v1141 = vadd.f32 %v720, %v972
    %v1142 = vxor.u32 %v1141, 2147483648
    %v1143 = vmul.f32 %v1142, 1.442695
    %v1144 = vpow.pop %v1143
    %v1145 = vadd.f32 %v1144, 1.0
    %v1146 = vrcp.pop %v1145
    %v1147 = vmul.f32 1.0, %v1146
    %v1148 = vadd.f32 %v803, %v1055
    %v1149 = vxor.u32 %v1148, 2147483648
    %v1150 = vmul.f32 %v1149, 1.442695
    %v1151 = vpow.pop %v1150
    %v1152 = vadd.f32 %v1151, 1.0
    %v1153 = vrcp.pop %v1152
    %v1154 = vmul.f32 1.0, %v1153
    %v1155 = vmul.f32 %v1147, %v1138
    %v1156 = vadd.f32 %v886, %v1155
    %v1157 = vtanh.pop %v1156
    %v1158 = vsub.f32 1.0, %v1154
    %v1159 = vmul.f32 %v1158, %v1157
    %v1160 = vmul.f32 %v1154, %v636
    %v1161 = vadd.f32 %v1159, %v1160
    %s1162 = scalar_lea.vmem [#allocation11], 8
    %1163 = vst.msk [vmem:[%s1162] sm:$0xff] %vm123, %v1161
    %v1164 = vld [vmem:[%s7] sm:$0xff]
    %v1165 = vld [vmem:[%s7 + $0x8] sm:$0xff]
    %v1166 = vld [vmem:[%s7 + $0x10] sm:$0xff]
    %v1167 = vld [vmem:[%s7 + $0x18] sm:$0xff]
    %v1168 = vld [vmem:[%s8] sm:$0x1]
    %v1170 = vlaneseq
    %v1171 = vshrl.u32 %v1170, 7
    %v1172 = vsub.s32 0, %v1171
    %v1173 = vrot.slane %v1168, %v1172
    %v1176 = vsel %vm123, %v1161, 0
    %1178 = vmatprep.subr.mxu0 0.0
    %1179 = vmatpush1.msra.mxu0 0.0
    %1180 = vmatprep.subr.mxu0 0.0
    %1181 = vmatpush1.msra.mxu0 0.0
    %1182 = vmatprep.subr.mxu0 0.0
    %1183 = vmatpush1.msra.mxu0 0.0
    %1184 = vmatprep.subr.mxu0 0.0
    %1185 = vmatpush1.msra.mxu0 0.0
    %1186 = vmatprep.subr.mxu0 0.0
    %1187 = vmatpush1.msra.mxu0 0.0
    %1188 = vmatprep.subr.mxu0 0.0
    %1189 = vmatpush1.msra.mxu0 0.0
    %1190 = vmatprep.subr.mxu0 0.0
    %1191 = vmatpush1.msra.mxu0 0.0
    %1192 = vmatprep.subr.mxu0 0.0
    %1193 = vmatpush1.msra.mxu0 0.0
    %1194 = vmatprep.subr.mxu0 0.0
    %1195 = vmatpush1.msra.mxu0 0.0
    %1196 = vmatprep.subr.mxu0 0.0
    %1197 = vmatpush1.msra.mxu0 0.0
    %1198 = vmatprep.subr.mxu0 0.0
    %1199 = vmatpush1.msra.mxu0 0.0
    %1200 = vmatprep.subr.mxu0 0.0
    %1201 = vmatpush1.msra.mxu0 0.0
    %1202 = vmatprep.subr.mxu0 0.0
    %1203 = vmatpush1.msra.mxu0 %v1167
    %1204 = vmatprep.subr.mxu0 0.0
    %1205 = vmatpush1.msra.mxu0 %v1166
    %1206 = vmatprep.subr.mxu0 0.0
    %1207 = vmatpush1.msra.mxu0 %v1165
    %1208 = vmatprep.subr.mxu0 0.0
    %1209 = vmatpush1.msra.mxu0 %v1164
    %1210 = vmatprep.subr.mxu0 0.0
    %1211 = vmatpush2.msra.mxu0 0.0
    %1212 = vmatprep.subr.mxu0 0.0
    %1213 = vmatpush2.msra.mxu0 0.0
    %1214 = vmatprep.subr.mxu0 0.0
    %1215 = vmatpush2.msra.mxu0 0.0
    %1216 = vmatprep.subr.mxu0 0.0
    %1217 = vmatpush2.msra.mxu0 0.0
    %1218 = vmatprep.subr.mxu0 0.0
    %1219 = vmatpush2.msra.mxu0 0.0
    %1220 = vmatprep.subr.mxu0 0.0
    %1221 = vmatpush2.msra.mxu0 0.0
    %1222 = vmatprep.subr.mxu0 0.0
    %1223 = vmatpush2.msra.mxu0 0.0
    %1224 = vmatprep.subr.mxu0 0.0
    %1225 = vmatpush2.msra.mxu0 0.0
    %1226 = vmatprep.subr.mxu0 0.0
    %1227 = vmatpush2.msra.mxu0 0.0
    %1228 = vmatprep.subr.mxu0 0.0
    %1229 = vmatpush2.msra.mxu0 0.0
    %1230 = vmatprep.subr.mxu0 0.0
    %1231 = vmatpush2.msra.mxu0 0.0
    %1232 = vmatprep.subr.mxu0 0.0
    %1233 = vmatpush2.msra.mxu0 0.0
    %1234 = vmatprep.subr.mxu0 0.0
    %1235 = vmatpush2.msra.mxu0 0.0
    %1236 = vmatprep.subr.mxu0 0.0
    %1237 = vmatpush2.msra.mxu0 0.0
    %1238 = vmatprep.subr.mxu0 0.0
    %1239 = vmatpush2.msra.mxu0 0.0
    %1240 = vmatprep.subr.mxu0 0.0
    %1241 = vmatpush2.msra.mxu0 0.0
    %1242 = vmatprep.mubr.f32.mxu0 0.0
    %1243 = vmatmul.mubr.f32.gmra.mxu0 %v1176
    %v1244 = vpop.f32.mrf.mxu0
    %v1245 = vadd.f32 %v1173, %v1244
    %v1246 = vpop.f32.mrf.mxu0
    %1247 = vdwg.mxu0
    %1248 = vmax.xlane.f32.xlu0 %v1245
    %v1249 = vpop.xlane.xlu0 %1248
    %v1250 = vsub.f32 %v1245, %v1249
    %v1251 = vmul.f32 %v1250, 1.442695
    %v1252 = vpow.pop %v1251
    %1253 = vadd.xlane.f32.xlu0 %v1252
    %v1254 = vpop.xlane.xlu0 %1253
    %v1255 = vlog2.pop %v1254
    %v1256 = vmul.f32 %v1255, 0.6931472
    %v1257 = vsub.f32 %v1250, %v1256
    %1258 = vst [vmem:[#allocation10] sm:$0xff] %v1257
    // Predicated region
    $region50: #{tpu_custom_call.1} parent=1 // pred_check
      _
    $region51: #{tpu_custom_call.1} parent=1 // pred_check_branch
      %1260 = sbr.rel (0) target = $region53
    $region52: #{tpu_custom_call.1} parent=1 // pred_region
      %s1262 = ssub.s32 128, 128
      %1263 = vsyncadd [#allocation5], %s1262
      %s1265 = sshll.u32 [#allocation10], 4
      %s1266 = int_to_ptr.vmem [resolvable:$true] %s1265
      %1268 = dma.vmem_to_hbm [thread:$0]  %s1266, 128, %s9, [#allocation5]
    $region53: #{tpu_custom_call.1} parent=1 // pred_fallthru
      _
    // Predicated region
    $region54: #{tpu_custom_call.1} parent=1 // pred_check
      _
    $region55: #{tpu_custom_call.1} parent=1 // pred_check_branch
      %1270 = sbr.rel (0) target = $region57
    $region56: #{tpu_custom_call.1} parent=1 // pred_region
      %s1272 = ssub.s32 256, 256
      %1273 = vsyncadd [#allocation12], %s1272
      %s1274 = sshll.u32 [#allocation11], 4
      %s1275 = int_to_ptr.vmem [resolvable:$true] %s1274
      %1280 = dma.vmem_to_hbm [thread:$0]  %s1275, 256, %s10, [#allocation12], 128, 128, 8
    $region57: #{tpu_custom_call.1} parent=1 // pred_fallthru
      _
    // Predicated region
    $region58: #{tpu_custom_call.1} parent=1 // pred_check
      _
    $region59: #{tpu_custom_call.1} parent=1 // pred_check_branch
      %1282 = sbr.rel (0) target = $region61
    $region60: #{tpu_custom_call.1} parent=1 // pred_region
      %1283 = dma.done [#allocation5], 128
    $region61: #{tpu_custom_call.1} parent=1 // pred_fallthru
      _
    // Predicated region
    $region62: #{tpu_custom_call.1} parent=1 // pred_check
      _
    $region63: #{tpu_custom_call.1} parent=1 // pred_check_branch
      %1285 = sbr.rel (0) target = $region65
    $region64: #{tpu_custom_call.1} parent=1 // pred_region
      %1286 = dma.done [#allocation12], 256
    $region65: #{tpu_custom_call.1} parent=1 // pred_fallthru
      _
    %1287 = vsyncpa [#allocation4], 1
    %1288 = vsyncpa [#allocation9], 1
    %1289 = vsyncpa [#allocation5], 1
    %1290 = vsyncpa [#allocation12], 1
    %1291 = vsyncpa [#allocation6], 1

</llo_original>
